<compile_context>
chip_gen: v7x
topology: tpu7x:2x2x1
jax: 0.10.0
libtpu: 0.0.40
codegen_flags: <defaults>
</compile_context>

<pallas_src>
import math

import jax
import jax.numpy as jnp
import numpy as np
from jax.experimental import pallas as pl
from jax.experimental.pallas import tpu as pltpu


def _round_up(x, m):
    return ((x + m - 1) // m) * m


def _ps_roi_pool_kernel(img_ids_ref, coords_ref, bounds_ref, binsel_ref,
                        group_ref, feat_hi_ref, feat_lo_ref, out_ref):
    """One grid step == one (channel-tile, ROI-chunk) pair.

    img_ids_ref : (G,) int32 SMEM   scalar prefetch; only used by index_maps
    coords_ref  : (2, HWp)  f32 VMEM row0 = pixel h coord, row1 = pixel w coord
                                     (padded pixels carry -1 -> never selected)
    bounds_ref  : (1, M2p, 8) f32 VMEM per (roi-slot, bin) row:
                                     hstart, hend, wstart, wend, inv_area, pad
    binsel_ref  : (M2p, Ct) f32 VMEM one-hot: 1 iff channel's bin == row's bin
    group_ref   : (Rblk, M2p) f32 VMEM one-hot: 1 iff row belongs to roi slot r
    feat_hi/lo  : (1, HWp, Ct) bf16 VMEM hi/lo bf16 split of the image tile
    out_ref     : (1, Rblk, Ct) f32 VMEM pooled means for this chunk/ch-tile
    """
    del img_ids_ref  # consumed only by the feature index_map

    b = bounds_ref[0]                          # (M2p, 8)
    hstart = b[:, 0:1]
    hend = b[:, 1:2]
    wstart = b[:, 2:3]
    wend = b[:, 3:4]
    inv_area = b[:, 4:5]                       # 0 for empty bins / padded rows

    hc = coords_ref[0:1, :]                    # (1, HWp)
    wc = coords_ref[1:2, :]                    # (1, HWp)

    # (M2p, HWp) indicator of pixels inside each (roi-slot, bin) rectangle.
    # Compare in f32 (coords are small exact integers); the 0/1 indicator is
    # exact in bf16, which feeds the MXU at its native input width.
    mask = ((hc >= hstart) & (hc < hend) & (wc >= wstart) & (wc < wend))
    mask = mask.astype(jnp.bfloat16)

    # Per-(roi, bin) spatial sums over this channel tile: two bf16 MXU passes
    # (hi + lo split of the f32 features) with f32 accumulation, instead of a
    # precision=HIGHEST f32 matmul (3-6 passes).
    sums = jnp.dot(mask, feat_hi_ref[0], preferred_element_type=jnp.float32)
    sums = sums + jnp.dot(mask, feat_lo_ref[0],
                          preferred_element_type=jnp.float32)   # (M2p, Ct)

    # Scale rows to per-bin means and keep, per channel, only its own bin's row.
    masked = sums * (binsel_ref[...] * inv_area)                # (M2p, Ct)

    # Per-ROI selection via the group one-hot.  Only one row contributes per
    # (roi, channel), so this is a pure selection; run it at HIGHEST precision
    # (tiny matmul: M=Rblk, K=M2p) so no accuracy is lost.
    out = jnp.dot(group_ref[...], masked,
                  preferred_element_type=jnp.float32,
                  precision=jax.lax.Precision.HIGHEST)          # (Rblk, Ct)
    out_ref[0] = out


def ps_roi_pool(features, rois, pooled_height, pooled_width, spatial_scale,
                group_size, output_dim, *, roi_block=None):
    """PSROIPool.forward.

    features : (N, C, H, W) float32, NCHW, C = output_dim * group_size**2
    rois     : (R, 5) float32, rows = (batch_idx, x1, y1, x2, y2)
    returns  : (R, output_dim, pooled_height, pooled_width) float32
    """
    N, C, H, W = features.shape
    gs = int(group_size)
    GS2 = gs * gs
    assert C == output_dim * GS2
    # R-FCN mapping gh=ph, gw=pw requires group_size == pooled size.
    assert gs == pooled_height == pooled_width
    assert rois.shape[1] == 5
    R = rois.shape[0]
    assert R >= 1
    HW = H * W

    # ---- static sizes ------------------------------------------------------
    HWp = _round_up(HW, 128)
    Cp0 = _round_up(C, 128)

    if roi_block is None:
        roi_block = max(1, 256 // GS2)      # fill ~256 MXU rows per step
    Rblk = int(max(1, min(roi_block, R)))
    M2 = Rblk * GS2                         # mask rows per chunk
    M2p = _round_up(M2, 8)
    NQ = 8                                  # boundary quantities (5 used)

    # VMEM budget -> channel tile size (matters for v7x's 64 MiB VMEM).
    try:
        vmem_cap = int(pltpu.get_tpu_info().vmem_capacity_bytes)
    except Exception:
        vmem_cap = 64 * 1024 * 1024
    budget = min(vmem_cap // 2, 48 * 1024 * 1024)

    def _block_bytes(ct):
        feat = 2 * 2 * (HWp * ct * 2)               # hi+lo, double-buffered
        binsel_b = 2 * (M2p * ct * 4)
        outb = 2 * (Rblk * ct * 4)
        interm = M2p * HWp * 2 + 3 * (M2p * ct * 4)  # mask + sums + masked
        consts = 2 * HWp * 4 + 2 * (M2p * NQ * 4) + Rblk * M2p * 4
        return feat + binsel_b + outb + interm + consts

    Ct = Cp0
    while Ct > 128 and _block_bytes(Ct) > budget:
        Ct -= 128
    Cp = _round_up(Cp0, Ct)                 # make Ct divide Cp exactly
    n_ct = Cp // Ct

    est = _block_bytes(Ct)
    vmem_limit = int(min(max(est + 16 * 1024 * 1024, 32 * 1024 * 1024),
                         int(vmem_cap * 0.9)))

    # ---- feature prep: NHWC layout + hi/lo bf16 split (done once per call) --
    feats = jnp.transpose(features.astype(jnp.float32), (0, 2, 3, 1))
    feats = feats.reshape(N, HW, C)
    feats = jnp.pad(feats, ((0, 0), (0, HWp - HW), (0, Cp - C)))
    feats_hi = feats.astype(jnp.bfloat16)
    feats_lo = (feats - feats_hi.astype(jnp.float32)).astype(jnp.bfloat16)

    # ---- ROI-independent constant tables ------------------------------------
    hw_idx = jnp.arange(HW, dtype=jnp.int32)
    h_coord = (hw_idx // W).astype(jnp.float32)
    w_coord = (hw_idx % W).astype(jnp.float32)
    coords = jnp.stack([h_coord, w_coord], axis=0)                  # (2, HW)
    coords = jnp.pad(coords, ((0, 0), (0, HWp - HW)), constant_values=-1.0)

    c_idx = jnp.arange(Cp, dtype=jnp.int32)
    j_idx = jnp.arange(M2p, dtype=jnp.int32)
    binsel = (((c_idx[None, :] % GS2) == (j_idx[:, None] % GS2))
              & (j_idx[:, None] < M2)).astype(jnp.float32)          # (M2p, Cp)

    r_idx = jnp.arange(Rblk, dtype=jnp.int32)
    group = (((j_idx[None, :] // GS2) == r_idx[:, None])
             & (j_idx[None, :] < M2)).astype(jnp.float32)           # (Rblk, M2p)

    # ---- group ROIs by image into fixed-size chunks (static shapes) --------
    batch_ids = rois[:, 0].astype(jnp.int32)
    roi_xyxy = rois[:, 1:5].astype(jnp.float32)

    order = jnp.argsort(batch_ids)
    inv_order = jnp.argsort(order)
    sorted_bids = batch_ids[order]
    sorted_xyxy = roi_xyxy[order]

    counts = jnp.bincount(sorted_bids, length=N)                    # (N,)
    chunks_per_img = (counts + Rblk - 1) // Rblk
    cum_chunks = jnp.cumsum(chunks_per_img)
    chunk_img_start = cum_chunks - chunks_per_img
    roi_img_start = jnp.cumsum(counts) - counts
    total_chunks = cum_chunks[-1]

    # Static upper bound on the number of chunks.
    G = int(math.ceil(R / Rblk)) + min(N, R)

    g_idx = jnp.arange(G, dtype=jnp.int32)
    # Padded chunks (g >= total_chunks) reuse the last valid chunk's image so
    # they trigger no extra feature DMA.
    g_clamped = jnp.minimum(g_idx, total_chunks - 1)
    chunk_image = jnp.searchsorted(cum_chunks, g_clamped,
                                   side='right').astype(jnp.int32)
    chunk_image = jnp.minimum(chunk_image, N - 1)

    chunk_local = g_idx - chunk_img_start[chunk_image]
    slot = jnp.arange(Rblk, dtype=jnp.int32)
    roi_pos = chunk_local[:, None] * Rblk + slot[None, :]           # (G, Rblk)
    valid = (roi_pos >= 0) & (roi_pos < counts[chunk_image][:, None])
    src = jnp.clip(roi_img_start[chunk_image][:, None] + roi_pos, 0, R - 1)
    roi_blocks = jnp.where(valid[..., None], sorted_xyxy[src], 0.0)  # (G,Rblk,4)

    # ---- per-(roi, bin) boundary math hoisted out of the kernel -------------
    scale = float(spatial_scale)
    x1 = roi_blocks[..., 0]
    y1 = roi_blocks[..., 1]
    x2 = roi_blocks[..., 2]
    y2 = roi_blocks[..., 3]
    # roundf() in the CUDA kernel; ROI coords are non-negative so floor(x+0.5)
    # matches half-away-from-zero rounding.
    roi_start_w = jnp.floor(x1 + 0.5) * scale
    roi_start_h = jnp.floor(y1 + 0.5) * scale
    roi_end_w = (jnp.floor(x2 + 0.5) + 1.0) * scale
    roi_end_h = (jnp.floor(y2 + 0.5) + 1.0) * scale
    roi_w = jnp.maximum(roi_end_w - roi_start_w, 0.1)
    roi_h = jnp.maximum(roi_end_h - roi_start_h, 0.1)
    bin_h = roi_h / float(pooled_height)
    bin_w = roi_w / float(pooled_width)

    b_iota = jnp.arange(GS2, dtype=jnp.int32)
    ph3 = (b_iota // gs).astype(jnp.float32)[None, None, :]
    pw3 = (b_iota % gs).astype(jnp.float32)[None, None, :]
    bh3 = bin_h[..., None]
    bw3 = bin_w[..., None]
    rsh3 = roi_start_h[..., None]
    rsw3 = roi_start_w[..., None]

    hstart = jnp.clip(jnp.floor(ph3 * bh3 + rsh3), 0.0, float(H))
    hend = jnp.clip(jnp.ceil((ph3 + 1.0) * bh3 + rsh3), 0.0, float(H))
    wstart = jnp.clip(jnp.floor(pw3 * bw3 + rsw3), 0.0, float(W))
    wend = jnp.clip(jnp.ceil((pw3 + 1.0) * bw3 + rsw3), 0.0, float(W))
    area = (hend - hstart) * (wend - wstart)
    empty = (hend <= hstart) | (wend <= wstart)
    inv_area = jnp.where(empty, 0.0, 1.0 / jnp.maximum(area, 1.0))

    bounds = jnp.stack([hstart, hend, wstart, wend, inv_area], axis=-1)
    bounds = bounds.reshape(G, M2, 5)
    bounds = jnp.pad(bounds, ((0, 0), (0, M2p - M2), (0, NQ - 5)))   # (G,M2p,8)

    # ---- pallas_call --------------------------------------------------------
    out = pl.pallas_call(
        _ps_roi_pool_kernel,
        out_shape=jax.ShapeDtypeStruct((G, Rblk, Cp), jnp.float32),
        grid_spec=pltpu.PrefetchScalarGridSpec(
            num_scalar_prefetch=1,            # chunk -> image id (SMEM)
            grid=(n_ct, G),                   # chunks innermost: feature block
                                              # reused across same-image chunks
            in_specs=[
                pl.BlockSpec((2, HWp), lambda ci, g, img: (0, 0)),
                pl.BlockSpec((1, M2p, NQ), lambda ci, g, img: (g, 0, 0)),
                pl.BlockSpec((M2p, Ct), lambda ci, g, img: (0, ci)),
                pl.BlockSpec((Rblk, M2p), lambda ci, g, img: (0, 0)),
                pl.BlockSpec((1, HWp, Ct), lambda ci, g, img: (img[g], 0, ci)),
                pl.BlockSpec((1, HWp, Ct), lambda ci, g, img: (img[g], 0, ci)),
            ],
            out_specs=pl.BlockSpec((1, Rblk, Ct), lambda ci, g, img: (g, 0, ci)),
        ),
        compiler_params=pltpu.CompilerParams(
            dimension_semantics=("parallel", "parallel"),
            vmem_limit_bytes=vmem_limit),
    )(chunk_image, coords, bounds, binsel, group, feats_hi, feats_lo)

    # ---- scatter chunk outputs back to the original ROI order ---------------
    pos_in_img = jnp.arange(R, dtype=jnp.int32) - roi_img_start[sorted_bids]
    flat_sorted = ((chunk_img_start[sorted_bids] + pos_in_img // Rblk) * Rblk
                   + pos_in_img % Rblk)                               # (R,)
    out_rows = out.reshape(G * Rblk, Cp)[flat_sorted][inv_order]      # (R, Cp)
    return out_rows[:, :C].reshape(R, output_dim, pooled_height, pooled_width)


class PSROIPool:
    """JAX/Pallas port of the PyTorch PSROIPool module (forward only)."""

    def __init__(self, pooled_height, pooled_width, spatial_scale, group_size,
                 output_dim):
        self.pooled_height = int(pooled_height)
        self.pooled_width = int(pooled_width)
        self.spatial_scale = float(spatial_scale)
        self.group_size = int(group_size)
        self.output_dim = int(output_dim)

    def __call__(self, features, rois):
        return ps_roi_pool(features, rois, self.pooled_height,
                           self.pooled_width, self.spatial_scale,
                           self.group_size, self.output_dim)


def _ps_roi_pool_reference(features, rois, pooled_h, pooled_w, spatial_scale,
                           gs, od):
    """Pure-JAX (non-Pallas) reference, same f32 bin-boundary math as CUDA."""
    N, C, H, W = features.shape
    R = rois.shape[0]
    feats = features.astype(jnp.float32)
    outs = []
    for n in range(R):
        b = int(rois[n, 0])
        x1, y1, x2, y2 = (rois[n, 1].astype(jnp.float32),
                          rois[n, 2].astype(jnp.float32),
                          rois[n, 3].astype(jnp.float32),
                          rois[n, 4].astype(jnp.float32))
        rsw = jnp.floor(x1 + 0.5) * spatial_scale
        rsh = jnp.floor(y1 + 0.5) * spatial_scale
        rew = (jnp.floor(x2 + 0.5) + 1.0) * spatial_scale
        reh = (jnp.floor(y2 + 0.5) + 1.0) * spatial_scale
        roi_w = jnp.maximum(rew - rsw, 0.1)
        roi_h = jnp.maximum(reh - rsh, 0.1)
        bh = roi_h / float(pooled_h)
        bw = roi_w / float(pooled_w)
        c_iota = jnp.arange(C)
        ph = ((c_iota // gs) % gs).astype(jnp.float32)
        pw = (c_iota % gs).astype(jnp.float32)
        hstart = jnp.clip(jnp.floor(ph * bh + rsh), 0.0, float(H))
        hend = jnp.clip(jnp.ceil((ph + 1.0) * bh + rsh), 0.0, float(H))
        wstart = jnp.clip(jnp.floor(pw * bw + rsw), 0.0, float(W))
        wend = jnp.clip(jnp.ceil((pw + 1.0) * bw + rsw), 0.0, float(W))
        h_idx = jnp.arange(H, dtype=jnp.float32)[None, :, None]
        w_idx = jnp.arange(W, dtype=jnp.float32)[None, None, :]
        mask = ((h_idx >= hstart[:, None, None]) & (h_idx < hend[:, None, None]) &
                (w_idx >= wstart[:, None, None]) & (w_idx < wend[:, None, None]))
        summed = jnp.sum(jnp.where(mask, feats[b], 0.0), axis=(1, 2))
        area = (hend - hstart) * (wend - wstart)
        empty = (hend <= hstart) | (wend <= wstart)
        val = jnp.where(empty, 0.0, summed / jnp.maximum(area, 1.0))
        outs.append(val.reshape(od, gs, gs))
    return jnp.stack(outs, axis=0)


if __name__ == "__main__":
    key = jax.random.PRNGKey(0)
    k_feat, k_bid, k_xy, k_wh = jax.random.split(key, 4)

    # Small, consistent shapes: C must equal output_dim * group_size^2.
    batch, output_dim, group_size = 2, 4, 3
    pooled_h = pooled_w = group_size
    C = output_dim * group_size * group_size        # 36
    H = W = 16
    spatial_scale = 0.25                            # ROI coords in a 64x64 image

    features = jax.random.normal(k_feat, (batch, C, H, W), dtype=jnp.float32)

    num_rois = 5
    bids = jax.random.randint(k_bid, (num_rois, 1), 0, batch).astype(jnp.float32)
    xy1 = jax.random.uniform(k_xy, (num_rois, 2), minval=0.0, maxval=30.0)
    wh = jax.random.uniform(k_wh, (num_rois, 2), minval=8.0, maxval=30.0)
    xy2 = jnp.clip(xy1 + wh, 0.0, 63.0)
    rois = jnp.concatenate([bids, xy1, xy2], axis=1).astype(jnp.float32)

    module = PSROIPool(pooled_h, pooled_w, spatial_scale, group_size, output_dim)
    out = module(features, rois)
    jax.block_until_ready(out)

    assert out.shape == (num_rois, output_dim, pooled_h, pooled_w)
    assert bool(jnp.all(jnp.isfinite(out)))

    ref = _ps_roi_pool_reference(features, rois, pooled_h, pooled_w,
                                 spatial_scale, group_size, output_dim)
    np.testing.assert_allclose(np.asarray(out), np.asarray(ref),
                               rtol=1e-3, atol=1e-3)
    print("KERNEL_OK")
</pallas_src>

<mosaic_0001>
module attributes {stable_mosaic.version = 11 : i64} {
  func.func @_ps_roi_pool_kernel(%arg0: i32, %arg1: i32, %arg2: memref<3xi32, #tpu.memory_space<smem>>, %arg3: memref<2x256xf32, #tpu.memory_space<vmem>>, %arg4: memref<1x48x8xf32, #tpu.memory_space<vmem>>, %arg5: memref<48x128xf32, #tpu.memory_space<vmem>>, %arg6: memref<5x48xf32, #tpu.memory_space<vmem>>, %arg7: memref<1x256x128xbf16, #tpu.memory_space<vmem>>, %arg8: memref<1x256x128xbf16, #tpu.memory_space<vmem>>, %arg9: memref<1x5x128xf32, #tpu.memory_space<vmem>>) attributes {dimension_semantics = [#tpu.dimension_semantics<parallel>, #tpu.dimension_semantics<parallel>], iteration_bounds = array<i64: 1, 3>, scalar_prefetch = 1 : i64, scratch_operands = 0 : i64, tpu.core_type = #tpu.core_type<tc>, window_params = [{pipeline_mode = #tpu.pipeline_mode<synchronous>, transform_indices = @transform_0, window_bounds = array<i64: 2, 256>}, {transform_indices = @transform_1, window_bounds = array<i64: 1, 48, 8>}, {transform_indices = @transform_2, window_bounds = array<i64: 48, 128>}, {pipeline_mode = #tpu.pipeline_mode<synchronous>, transform_indices = @transform_3, window_bounds = array<i64: 5, 48>}, {transform_indices = @transform_4, window_bounds = array<i64: 1, 256, 128>}, {transform_indices = @transform_5, window_bounds = array<i64: 1, 256, 128>}, {transform_indices = @transform_6, window_bounds = array<i64: 1, 5, 128>}]} {
    %c0 = arith.constant 0 : index
    %c0_0 = arith.constant 0 : index
    %c0_1 = arith.constant 0 : index
    %0 = vector.load %arg4[%c0, %c0_0, %c0_1] : memref<1x48x8xf32, #tpu.memory_space<vmem>>, vector<1x48x8xf32>
    %1 = vector.shape_cast %0 : vector<1x48x8xf32> to vector<48x8xf32>
    %2 = vector.extract_strided_slice %1 {offsets = [0, 0], sizes = [48, 1], strides = [1, 1]} : vector<48x8xf32> to vector<48x1xf32>
    %3 = vector.extract_strided_slice %1 {offsets = [0, 1], sizes = [48, 1], strides = [1, 1]} : vector<48x8xf32> to vector<48x1xf32>
    %4 = vector.extract_strided_slice %1 {offsets = [0, 2], sizes = [48, 1], strides = [1, 1]} : vector<48x8xf32> to vector<48x1xf32>
    %5 = vector.extract_strided_slice %1 {offsets = [0, 3], sizes = [48, 1], strides = [1, 1]} : vector<48x8xf32> to vector<48x1xf32>
    %6 = vector.extract_strided_slice %1 {offsets = [0, 4], sizes = [48, 1], strides = [1, 1]} : vector<48x8xf32> to vector<48x1xf32>
    %c0_2 = arith.constant 0 : index
    %c0_3 = arith.constant 0 : index
    %7 = vector.load %arg3[%c0_2, %c0_3] : memref<2x256xf32, #tpu.memory_space<vmem>>, vector<1x256xf32>
    %c1 = arith.constant 1 : index
    %c0_4 = arith.constant 0 : index
    %8 = vector.load %arg3[%c1, %c0_4] : memref<2x256xf32, #tpu.memory_space<vmem>>, vector<1x256xf32>
    %9 = vector.broadcast %7 : vector<1x256xf32> to vector<48x256xf32>
    %10 = vector.broadcast %2 : vector<48x1xf32> to vector<48x256xf32>
    %11 = arith.cmpf oge, %9, %10 : vector<48x256xf32>
    %12 = vector.broadcast %7 : vector<1x256xf32> to vector<48x256xf32>
    %13 = vector.broadcast %3 : vector<48x1xf32> to vector<48x256xf32>
    %14 = arith.cmpf olt, %12, %13 : vector<48x256xf32>
    %15 = arith.andi %11, %14 : vector<48x256xi1>
    %16 = vector.broadcast %8 : vector<1x256xf32> to vector<48x256xf32>
    %17 = vector.broadcast %4 : vector<48x1xf32> to vector<48x256xf32>
    %18 = arith.cmpf oge, %16, %17 : vector<48x256xf32>
    %19 = arith.andi %15, %18 : vector<48x256xi1>
    %20 = vector.broadcast %8 : vector<1x256xf32> to vector<48x256xf32>
    %21 = vector.broadcast %5 : vector<48x1xf32> to vector<48x256xf32>
    %22 = arith.cmpf olt, %20, %21 : vector<48x256xf32>
    %23 = arith.andi %19, %22 : vector<48x256xi1>
    %24 = arith.extui %23 : vector<48x256xi1> to vector<48x256xi32>
    %25 = arith.sitofp %24 : vector<48x256xi32> to vector<48x256xf32>
    %26 = arith.truncf %25 : vector<48x256xf32> to vector<48x256xbf16>
    %c0_5 = arith.constant 0 : index
    %c0_6 = arith.constant 0 : index
    %c0_7 = arith.constant 0 : index
    %27 = vector.load %arg7[%c0_5, %c0_6, %c0_7] : memref<1x256x128xbf16, #tpu.memory_space<vmem>>, vector<1x256x128xbf16>
    %28 = vector.shape_cast %27 : vector<1x256x128xbf16> to vector<256x128xbf16>
    %cst = arith.constant dense<0.000000e+00> : vector<48x128xf32>
    %29 = tpu.matmul %26, %28, %cst {dimension_numbers = #tpu.dot_dimension_numbers<[1], [0], [0], [1], [0, 0, 1, 1], [], []>} : vector<48x256xbf16>, vector<256x128xbf16>, vector<48x128xf32> -> vector<48x128xf32>
    %c0_8 = arith.constant 0 : index
    %c0_9 = arith.constant 0 : index
    %c0_10 = arith.constant 0 : index
    %30 = vector.load %arg8[%c0_8, %c0_9, %c0_10] : memref<1x256x128xbf16, #tpu.memory_space<vmem>>, vector<1x256x128xbf16>
    %31 = vector.shape_cast %30 : vector<1x256x128xbf16> to vector<256x128xbf16>
    %cst_11 = arith.constant dense<0.000000e+00> : vector<48x128xf32>
    %32 = tpu.matmul %26, %31, %cst_11 {dimension_numbers = #tpu.dot_dimension_numbers<[1], [0], [0], [1], [0, 0, 1, 1], [], []>} : vector<48x256xbf16>, vector<256x128xbf16>, vector<48x128xf32> -> vector<48x128xf32>
    %33 = arith.addf %29, %32 : vector<48x128xf32>
    %c0_12 = arith.constant 0 : index
    %c0_13 = arith.constant 0 : index
    %34 = vector.load %arg5[%c0_12, %c0_13] : memref<48x128xf32, #tpu.memory_space<vmem>>, vector<48x128xf32>
    %35 = vector.broadcast %6 : vector<48x1xf32> to vector<48x128xf32>
    %36 = arith.mulf %34, %35 : vector<48x128xf32>
    %37 = arith.mulf %33, %36 : vector<48x128xf32>
    %c0_14 = arith.constant 0 : index
    %c0_15 = arith.constant 0 : index
    %38 = vector.load %arg6[%c0_14, %c0_15] : memref<5x48xf32, #tpu.memory_space<vmem>>, vector<5x48xf32>
    %cst_16 = arith.constant dense<0.000000e+00> : vector<5x128xf32>
    %39 = tpu.matmul %38, %37, %cst_16 {dimension_numbers = #tpu.dot_dimension_numbers<[1], [0], [0], [1], [0, 0, 1, 1], [], []>, precision = #tpu.contract_precision<fp32>} : vector<5x48xf32>, vector<48x128xf32>, vector<5x128xf32> -> vector<5x128xf32>
    %c0_17 = arith.constant 0 : index
    %c0_18 = arith.constant 0 : index
    %c0_19 = arith.constant 0 : index
    %40 = vector.load %arg9[%c0_17, %c0_18, %c0_19] : memref<1x5x128xf32, #tpu.memory_space<vmem>>, vector<1x5x128xf32>
    %41 = vector.shape_cast %40 : vector<1x5x128xf32> to vector<5x128xf32>
    %42 = vector.shape_cast %39 : vector<5x128xf32> to vector<1x5x128xf32>
    tpu.vector_store %arg9[%c0_17, %c0_18, %c0_19], %42 {strides = array<i32>} : memref<1x5x128xf32, #tpu.memory_space<vmem>>, vector<1x5x128xf32>,
    return
  }
  func.func @transform_0(%arg0: i32, %arg1: i32, %arg2: memref<3xi32, #tpu.memory_space<smem>>) -> (i32, i32) {
    %c0_i32 = arith.constant 0 : i32
    %c0_i32_0 = arith.constant 0 : i32
    %c0_i32_1 = arith.constant 0 : i32
    return %c0_i32, %c0_i32_0 : i32, i32
  }
  func.func @transform_1(%arg0: i32, %arg1: i32, %arg2: memref<3xi32, #tpu.memory_space<smem>>) -> (i32, i32, i32) {
    %c0_i32 = arith.constant 0 : i32
    %c0_i32_0 = arith.constant 0 : i32
    %c0_i32_1 = arith.constant 0 : i32
    return %arg1, %c0_i32, %c0_i32_0 : i32, i32, i32
  }
  func.func @transform_2(%arg0: i32, %arg1: i32, %arg2: memref<3xi32, #tpu.memory_space<smem>>) -> (i32, i32) {
    %c0_i32 = arith.constant 0 : i32
    %c0_i32_0 = arith.constant 0 : i32
    return %c0_i32, %arg0 : i32, i32
  }
  func.func @transform_3(%arg0: i32, %arg1: i32, %arg2: memref<3xi32, #tpu.memory_space<smem>>) -> (i32, i32) {
    %c0_i32 = arith.constant 0 : i32
    %c0_i32_0 = arith.constant 0 : i32
    %c0_i32_1 = arith.constant 0 : i32
    return %c0_i32, %c0_i32_0 : i32, i32
  }
  func.func @transform_4(%arg0: i32, %arg1: i32, %arg2: memref<3xi32, #tpu.memory_space<smem>>) -> (i32, i32, i32) {
    %0 = arith.index_cast %arg1 : i32 to index
    %1 = memref.load %arg2[%0] : memref<3xi32, #tpu.memory_space<smem>>
    %c0_i32 = arith.constant 0 : i32
    %c0_i32_0 = arith.constant 0 : i32
    return %1, %c0_i32, %arg0 : i32, i32, i32
  }
  func.func @transform_5(%arg0: i32, %arg1: i32, %arg2: memref<3xi32, #tpu.memory_space<smem>>) -> (i32, i32, i32) {
    %0 = arith.index_cast %arg1 : i32 to index
    %1 = memref.load %arg2[%0] : memref<3xi32, #tpu.memory_space<smem>>
    %c0_i32 = arith.constant 0 : i32
    %c0_i32_0 = arith.constant 0 : i32
    return %1, %c0_i32, %arg0 : i32, i32, i32
  }
  func.func @transform_6(%arg0: i32, %arg1: i32, %arg2: memref<3xi32, #tpu.memory_space<smem>>) -> (i32, i32, i32) {
    %c0_i32 = arith.constant 0 : i32
    %c0_i32_0 = arith.constant 0 : i32
    return %arg1, %c0_i32, %arg0 : i32, i32, i32
  }
}

</mosaic_0001>

<llo_original>
// kernel: tpu_custom_call.1
$region0: #{tpu_custom_call.1}
  #allocation0 [shape = 'u32[]', space=smem, size = 0x4, offset = 0x4, fixed_abs, tag = 'smem constant byte address 0x4 - core index']
  #allocation1 [shape = 'u32[144,128]{1,0:T(1,128)}', space=vmem, size = 0x12000, scoped, tag = 'internal scratch']
  #allocation2 [shape = 's32[1]{0}', space=sflag, size = 0x4, scoped, tag = 'scoped memory for tpu_custom_call.1']
  #allocation3 [shape = 'u8[512]{0}', space=smem, size = 0x200, scoped, tag = 'prefetched SMEM operand 0']
  %s0 = inlined_call_operand.vmem [shape: s32[3], index: 0, kind: input, shape index: {}]
  %s1 = inlined_call_operand.vmem [shape: f32[2,256], index: 1, kind: input, shape index: {}]
  %s2 = inlined_call_operand.vmem [shape: f32[3,48,8], index: 2, kind: input, shape index: {}]
  %s3 = inlined_call_operand.vmem [shape: f32[48,128], index: 3, kind: input, shape index: {}]
  %s4 = inlined_call_operand.vmem [shape: f32[5,48], index: 4, kind: input, shape index: {}]
  %s5 = inlined_call_operand.hbm [shape: bf16[2,256,128], index: 5, kind: input, shape index: {}]
  %s6 = inlined_call_operand.hbm [shape: bf16[2,256,128], index: 6, kind: input, shape index: {}]
  %s7 = inlined_call_operand.vmem [shape: f32[3,5,128], index: 7, kind: output, shape index: {}]
  %s8 = sld [smem:[#allocation0]]
  $region65: #{tpu_custom_call.1} parent=0
    _
  %s10 = ssub.s32 1, %s8
  %s11 = scalar_select 0, %s10, %s8
  %s12 = sshll.u32 %s0, 4
  %s13 = int_to_ptr.vmem [resolvable:$true] %s12
  %15 = dma.vmem_to_smem %s13, 16, [#allocation3], [#allocation2]
  %16 = dma.done [#allocation2], 16
  %17 = sfence
  $region1: #{tpu_custom_call.1} parent=0
    #allocation4 [shape = 'u8[131072]{0}', space=vmem, size = 0x20000, scoped, tag = 'input window, operand 5']
    #allocation5 [shape = 's32[2]{0}', space=sflag, size = 0x8, scoped, tag = 'scoped memory for tpu_custom_call.1']
    #allocation6 [shape = 'u8[131072]{0}', space=vmem, size = 0x20000, scoped, tag = 'input window, operand 6']
    #allocation7 [shape = 's32[2]{0}', space=sflag, size = 0x8, scoped, tag = 'scoped memory for tpu_custom_call.1']
    %18 = vsyncpa [#allocation5], 0
    %s19 = scalar_lea.sflag [#allocation5], 1
    %20 = vsyncpa %s19, 0
    %21 = vsyncpa [#allocation7], 0
    %s22 = scalar_lea.sflag [#allocation7], 1
    %23 = vsyncpa %s22, 0
    loop: start=0, step=1, limit=5
    $region2: #{tpu_custom_call.1} parent=1 // loop_pre_header
      _
    $region3: #{tpu_custom_call.1} parent=1 // loop_header
      %s25 = sphi 0, %s29
      %p26 = scmp.ge.s32.totalorder %s25, 5
      %s32 = sphi 0, %s44
      %s33 = sphi 0, %s40
      %s34 = sphi 0, %s32
      %s35 = sphi 0, %s33
      %s36 = sphi 0, %s34
      %s37 = sphi 0, %s35
      %s45 = sphi 0, %s45
      %s47 = sphi 0, %s45
      %s48 = sphi 0, %s47
      %s62 = sphi 0, %s48
      %s68 = sphi 0, %s70
      %s71 = sphi 0, %s68
      %s72 = sphi 0, %s71
      %s88 = sphi 0, %s72
      %s94 = sphi 0, %s96
      %s97 = sphi 0, %s94
      %s98 = sphi 0, %s97
      %s114 = sphi 0, %s98
      %s118 = sphi 0, %s118
      %s120 = sphi 0, %s118
      %s121 = sphi 0, %s120
      %s135 = sphi 0, %s121
      %s145 = sphi 0, %s147
      %s148 = sphi 0, %s145
      %s149 = sphi 0, %s148
      %s165 = sphi 0, %s149
      %s175 = sphi 0, %s177
      %s178 = sphi 0, %s175
      %s179 = sphi 0, %s178
      %s195 = sphi 0, %s179
      %s203 = sphi 0, %s205
      %s206 = sphi 0, %s203
      %s207 = sphi 0, %s206
      %s223 = sphi 0, %s207
    $region4: #{tpu_custom_call.1} parent=1 // loop_header_branch
      %28 = sbr.rel (%p26) target = $region8
    $region5: #{tpu_custom_call.1} parent=1 // loop_body
      %s30 = ssub.s32 %s25, 1
      %s31 = ssub.s32 %s25, 2
      %s38 = sadd.s32 1, %s33
      %p39 = scmp.ge.s32.totalorder %s38, 3
      %s40 = scalar_select %p39, 0, %s38
      %s41 = sadd.s32 1, %s32
      %s42 = scalar_select %p39, %s41, %s32
      %p43 = scmp.ge.s32.totalorder %s42, 1
      %s44 = scalar_select %p43, 0, %s42
      %s46 = sadd.s32 %s45, 1
      %p49 = scmp.eq.s32.totalorder %s25, 2
      %p50 = scmp.ne.s32.totalorder %s45, %s47
      %p51 = scmp.eq.s32.totalorder %s25, 0
      %p52 = por %p50, %p51
      %p53 = scmp.ne.s32.totalorder %s45, %s47
      %p54 = scmp.eq.s32.totalorder %s30, 2
      %p55 = por %p53, %p54
      %p56 = scmp.ne.s32.totalorder %s47, %s48
      %p57 = scmp.eq.s32.totalorder %s30, 0
      %p58 = por %p56, %p57
      %p59 = scmp.ne.s32.totalorder %s47, %s48
      %p60 = scmp.eq.s32.totalorder %s31, 2
      %p61 = por %p59, %p60
      %p63 = scmp.ne.s32.totalorder %s48, %s62
      %p64 = scmp.eq.s32.totalorder %s31, 0
      %p65 = por %p63, %p64
      %s66 = ssub.s32 %s33, %s40
      %p67 = scmp.eq.s32.totalorder %s66, 0
      %s69 = sadd.s32 %s68, 1
      %s70 = scalar_select %p67, %s68, %s69
      %p73 = pneg %p67
      %p74 = scmp.eq.s32.totalorder %s25, 2
      %p75 = por %p73, %p74
      %p76 = scmp.ne.s32.totalorder %s68, %s71
      %p77 = scmp.eq.s32.totalorder %s25, 0
      %p78 = por %p76, %p77
      %p79 = scmp.ne.s32.totalorder %s68, %s71
      %p80 = scmp.eq.s32.totalorder %s30, 2
      %p81 = por %p79, %p80
      %p82 = scmp.ne.s32.totalorder %s71, %s72
      %p83 = scmp.eq.s32.totalorder %s30, 0
      %p84 = por %p82, %p83
      %p85 = scmp.ne.s32.totalorder %s71, %s72
      %p86 = scmp.eq.s32.totalorder %s31, 2
      %p87 = por %p85, %p86
      %p89 = scmp.ne.s32.totalorder %s72, %s88
      %p90 = scmp.eq.s32.totalorder %s31, 0
      %p91 = por %p89, %p90
      %s92 = ssub.s32 %s32, %s44
      %p93 = scmp.eq.s32.totalorder %s92, 0
      %s95 = sadd.s32 %s94, 1
      %s96 = scalar_select %p93, %s94, %s95
      %p99 = pneg %p93
      %p100 = scmp.eq.s32.totalorder %s25, 2
      %p101 = por %p99, %p100
      %p102 = scmp.ne.s32.totalorder %s94, %s97
      %p103 = scmp.eq.s32.totalorder %s25, 0
      %p104 = por %p102, %p103
      %p105 = scmp.ne.s32.totalorder %s94, %s97
      %p106 = scmp.eq.s32.totalorder %s30, 2
      %p107 = por %p105, %p106
      %p108 = scmp.ne.s32.totalorder %s97, %s98
      %p109 = scmp.eq.s32.totalorder %s30, 0
      %p110 = por %p108, %p109
      %p111 = scmp.ne.s32.totalorder %s97, %s98
      %p112 = scmp.eq.s32.totalorder %s31, 2
      %p113 = por %p111, %p112
      %p115 = scmp.ne.s32.totalorder %s98, %s114
      %p116 = scmp.eq.s32.totalorder %s31, 0
      %p117 = por %p115, %p116
      %s119 = sadd.s32 %s118, 1
      %p122 = scmp.eq.s32.totalorder %s25, 2
      %p123 = scmp.ne.s32.totalorder %s118, %s120
      %p124 = scmp.eq.s32.totalorder %s25, 0
      %p125 = por %p123, %p124
      %p126 = scmp.ne.s32.totalorder %s118, %s120
      %p127 = scmp.eq.s32.totalorder %s30, 2
      %p128 = por %p126, %p127
      %p129 = scmp.ne.s32.totalorder %s120, %s121
      %p130 = scmp.eq.s32.totalorder %s30, 0
      %p131 = por %p129, %p130
      %p132 = scmp.ne.s32.totalorder %s120, %s121
      %p133 = scmp.eq.s32.totalorder %s31, 2
      %p134 = por %p132, %p133
      %p136 = scmp.ne.s32.totalorder %s121, %s135
      %p137 = scmp.eq.s32.totalorder %s31, 0
      %p138 = por %p136, %p137
      %s139 = sld [smem:[#allocation3 + %s33]]
      %s140 = sld [smem:[#allocation3 + %s40]]
      %s141 = ssub.s32 %s139, %s140
      %s142 = ssub.s32 %s32, %s44
      %s143 = sor.u32 %s141, %s142
      %p144 = scmp.eq.s32.totalorder %s143, 0
      %s146 = sadd.s32 %s145, 1
      %s147 = scalar_select %p144, %s145, %s146
      %p150 = pneg %p144
      %p151 = scmp.eq.s32.totalorder %s25, 2
      %p152 = por %p150, %p151
      %p153 = scmp.ne.s32.totalorder %s145, %s148
      %p154 = scmp.eq.s32.totalorder %s25, 0
      %p155 = por %p153, %p154
      %p156 = scmp.ne.s32.totalorder %s145, %s148
      %p157 = scmp.eq.s32.totalorder %s30, 2
      %p158 = por %p156, %p157
      %p159 = scmp.ne.s32.totalorder %s148, %s149
      %p160 = scmp.eq.s32.totalorder %s30, 0
      %p161 = por %p159, %p160
      %p162 = scmp.ne.s32.totalorder %s148, %s149
      %p163 = scmp.eq.s32.totalorder %s31, 2
      %p164 = por %p162, %p163
      %p166 = scmp.ne.s32.totalorder %s149, %s165
      %p167 = scmp.eq.s32.totalorder %s31, 0
      %p168 = por %p166, %p167
      %s169 = sld [smem:[#allocation3 + %s33]]
      %s170 = sld [smem:[#allocation3 + %s40]]
      %s171 = ssub.s32 %s169, %s170
      %s172 = ssub.s32 %s32, %s44
      %s173 = sor.u32 %s171, %s172
      %p174 = scmp.eq.s32.totalorder %s173, 0
      %s176 = sadd.s32 %s175, 1
      %s177 = scalar_select %p174, %s175, %s176
      %p180 = pneg %p174
      %p181 = scmp.eq.s32.totalorder %s25, 2
      %p182 = por %p180, %p181
      %p183 = scmp.ne.s32.totalorder %s175, %s178
      %p184 = scmp.eq.s32.totalorder %s25, 0
      %p185 = por %p183, %p184
      %p186 = scmp.ne.s32.totalorder %s175, %s178
      %p187 = scmp.eq.s32.totalorder %s30, 2
      %p188 = por %p186, %p187
      %p189 = scmp.ne.s32.totalorder %s178, %s179
      %p190 = scmp.eq.s32.totalorder %s30, 0
      %p191 = por %p189, %p190
      %p192 = scmp.ne.s32.totalorder %s178, %s179
      %p193 = scmp.eq.s32.totalorder %s31, 2
      %p194 = por %p192, %p193
      %p196 = scmp.ne.s32.totalorder %s179, %s195
      %p197 = scmp.eq.s32.totalorder %s31, 0
      %p198 = por %p196, %p197
      %s199 = ssub.s32 %s33, %s40
      %s200 = ssub.s32 %s32, %s44
      %s201 = sor.u32 %s199, %s200
      %p202 = scmp.eq.s32.totalorder %s201, 0
      %s204 = sadd.s32 %s203, 1
      %s205 = scalar_select %p202, %s203, %s204
      %p208 = pneg %p202
      %p209 = scmp.eq.s32.totalorder %s25, 2
      %p210 = por %p208, %p209
      %p211 = scmp.ne.s32.totalorder %s203, %s206
      %p212 = scmp.eq.s32.totalorder %s25, 0
      %p213 = por %p211, %p212
      %p214 = scmp.ne.s32.totalorder %s203, %s206
      %p215 = scmp.eq.s32.totalorder %s30, 2
      %p216 = por %p214, %p215
      %p217 = scmp.ne.s32.totalorder %s206, %s207
      %p218 = scmp.eq.s32.totalorder %s30, 0
      %p219 = por %p217, %p218
      %p220 = scmp.ne.s32.totalorder %s206, %s207
      %p221 = scmp.eq.s32.totalorder %s31, 2
      %p222 = por %p220, %p221
      %p224 = scmp.ne.s32.totalorder %s207, %s223
      %p225 = scmp.eq.s32.totalorder %s31, 0
      %p226 = por %p224, %p225
      %p227 = scmp.le.s32.totalorder 1, %s25
      %p228 = scmp.lt.s32.totalorder %s25, 4
      %p229 = pnand %p227, %p228
      %p230 = pneg %p229
      // Predicated region
      $region9: #{tpu_custom_call.1} parent=5 // pred_check
        _
      $region10: #{tpu_custom_call.1} parent=5 // pred_check_branch
        %232 = sbr.rel (%p229) target = $region12
      $region11: #{tpu_custom_call.1} parent=5 // pred_region
        %s233 = ssub.s32 %s25, 1
        // Predicated region
        $region13: #{tpu_custom_call.1} parent=11 // pred_check
          %p234 = pneg %p58
        $region14: #{tpu_custom_call.1} parent=11 // pred_check_branch
          %236 = sbr.rel (%p234) target = $region16
        $region15: #{tpu_custom_call.1} parent=11 // pred_region
          _
        $region16: #{tpu_custom_call.1} parent=11 // pred_fallthru
          _
        // Predicated region
        $region17: #{tpu_custom_call.1} parent=11 // pred_check
          %p237 = pneg %p110
        $region18: #{tpu_custom_call.1} parent=11 // pred_check_branch
          %239 = sbr.rel (%p237) target = $region20
        $region19: #{tpu_custom_call.1} parent=11 // pred_region
          %p240 = scmp.lt.s32.totalorder %s34, 0
          %s241 = scalar_select %p240, %s34, 0
          %s242 = smul.addr %s241, 8
          %s243 = scalar_lea.vmem %s3, %s242
        $region20: #{tpu_custom_call.1} parent=11 // pred_fallthru
          _
        // Predicated region
        $region21: #{tpu_custom_call.1} parent=11 // pred_check
          %p244 = pneg %p131
        $region22: #{tpu_custom_call.1} parent=11 // pred_check_branch
          %246 = sbr.rel (%p244) target = $region24
        $region23: #{tpu_custom_call.1} parent=11 // pred_region
          _
        $region24: #{tpu_custom_call.1} parent=11 // pred_fallthru
          _
      $region12: #{tpu_custom_call.1} parent=5 // pred_fallthru
        _
      %p247 = scmp.lt.s32.totalorder %s25, 3
      // Predicated region
      $region25: #{tpu_custom_call.1} parent=5 // pred_check
        %p248 = pneg %p247
      $region26: #{tpu_custom_call.1} parent=5 // pred_check_branch
        %250 = sbr.rel (%p248) target = $region28
      $region27: #{tpu_custom_call.1} parent=5 // pred_region
        // Predicated region
        $region29: #{tpu_custom_call.1} parent=27 // pred_check
          %p251 = pneg %p78
        $region30: #{tpu_custom_call.1} parent=27 // pred_check_branch
          %253 = sbr.rel (%p251) target = $region32
        $region31: #{tpu_custom_call.1} parent=27 // pred_region
          %p254 = scmp.lt.s32.totalorder %s33, 2
          %s255 = scalar_select %p254, %s33, 2
          %s256 = smul.addr %s255, 6
          %s257 = smul.addr %s256, 8
          %s258 = scalar_lea.vmem %s2, %s257
        $region32: #{tpu_custom_call.1} parent=27 // pred_fallthru
          _
        // Predicated region
        $region33: #{tpu_custom_call.1} parent=27 // pred_check
          %p259 = pneg %p155
        $region34: #{tpu_custom_call.1} parent=27 // pred_check_branch
          %261 = sbr.rel (%p259) target = $region36
        $region35: #{tpu_custom_call.1} parent=27 // pred_region
          %s262 = sand.u32 %s145, 1
          %s263 = scalar_lea.sflag [#allocation5], %s262
          %s264 = sand.u32 %s145, 1
          %s265 = smul.addr %s264, 128
          %s266 = scalar_lea.vmem [#allocation4], %s265
          %s267 = sld [smem:[#allocation3 + %s33]]
          %s269 = ssub.s32 2048, 2048
          %270 = vsyncadd %s263, %s269
          %s271 = smul.addr %s267, 32
          %s272 = sadd.s32 %s32, %s271
          %s273 = smul.addr %s272, 64
          %s274 = scalar_lea.hbm %s5, %s273
          %s275 = sshll.u32 %s266, 4
          %s276 = int_to_ptr.vmem [resolvable:$true] %s275
          %281 = dma.hbm_to_vmem [thread:$0]  %s274, 2048, %s276, %s263, 64, 64, 4
        $region36: #{tpu_custom_call.1} parent=27 // pred_fallthru
          _
        // Predicated region
        $region37: #{tpu_custom_call.1} parent=27 // pred_check
          %p282 = pneg %p185
        $region38: #{tpu_custom_call.1} parent=27 // pred_check_branch
          %284 = sbr.rel (%p282) target = $region40
        $region39: #{tpu_custom_call.1} parent=27 // pred_region
          %s285 = sand.u32 %s175, 1
          %s286 = scalar_lea.sflag [#allocation7], %s285
          %s287 = sand.u32 %s175, 1
          %s288 = smul.addr %s287, 128
          %s289 = scalar_lea.vmem [#allocation6], %s288
          %s290 = sld [smem:[#allocation3 + %s33]]
          %s292 = ssub.s32 2048, 2048
          %293 = vsyncadd %s286, %s292
          %s294 = smul.addr %s290, 32
          %s295 = sadd.s32 %s32, %s294
          %s296 = smul.addr %s295, 64
          %s297 = scalar_lea.hbm %s6, %s296
          %s298 = sshll.u32 %s289, 4
          %s299 = int_to_ptr.vmem [resolvable:$true] %s298
          %304 = dma.hbm_to_vmem [thread:$0]  %s297, 2048, %s299, %s286, 64, 64, 4
        $region40: #{tpu_custom_call.1} parent=27 // pred_fallthru
          _
      $region28: #{tpu_custom_call.1} parent=5 // pred_fallthru
        _
      %p305 = scmp.le.s32.totalorder 1, %s25
      %p306 = scmp.lt.s32.totalorder %s25, 4
      %p307 = pnand %p305, %p306
      %p308 = pneg %p307
      // Predicated region
      $region41: #{tpu_custom_call.1} parent=5 // pred_check
        _
      $region42: #{tpu_custom_call.1} parent=5 // pred_check_branch
        %310 = sbr.rel (%p307) target = $region44
      $region43: #{tpu_custom_call.1} parent=5 // pred_region
        %s311 = ssub.s32 %s25, 1
        %s312 = sand.u32 %s148, 1
        %s313 = scalar_lea.sflag [#allocation5], %s312
        %s314 = sand.u32 %s148, 1
        %s315 = smul.addr %s314, 128
        %s316 = scalar_lea.vmem [#allocation4], %s315
        // Predicated region
        $region45: #{tpu_custom_call.1} parent=43 // pred_check
          %p317 = pneg %p161
        $region46: #{tpu_custom_call.1} parent=43 // pred_check_branch
          %319 = sbr.rel (%p317) target = $region48
        $region47: #{tpu_custom_call.1} parent=43 // pred_region
          %320 = dma.done %s313, 2048
        $region48: #{tpu_custom_call.1} parent=43 // pred_fallthru
          _
        %s321 = sand.u32 %s178, 1
        %s322 = scalar_lea.sflag [#allocation7], %s321
        %s323 = sand.u32 %s178, 1
        %s324 = smul.addr %s323, 128
        %s325 = scalar_lea.vmem [#allocation6], %s324
        // Predicated region
        $region49: #{tpu_custom_call.1} parent=43 // pred_check
          %p326 = pneg %p191
        $region50: #{tpu_custom_call.1} parent=43 // pred_check_branch
          %328 = sbr.rel (%p326) target = $region52
        $region51: #{tpu_custom_call.1} parent=43 // pred_region
          %329 = dma.done %s322, 2048
        $region52: #{tpu_custom_call.1} parent=43 // pred_fallthru
          _
        %p330 = pneg %p58
        %p331 = pneg %p55
        %p332 = scmp.lt.s32.totalorder %s35, 2
        %s333 = scalar_select %p332, %s35, 2
        %s334 = smul.addr %s333, 6
        %s335 = smul.addr %s334, 8
        %s336 = scalar_lea.vmem %s2, %s335
        %p337 = pneg %p84
        %p338 = pneg %p81
        %p339 = scmp.lt.s32.totalorder %s34, 0
        %s340 = scalar_select %p339, %s34, 0
        %s341 = smul.addr %s340, 8
        %s342 = scalar_lea.vmem %s3, %s341
        %p343 = pneg %p110
        %p344 = pneg %p107
        %p345 = pneg %p131
        %p346 = pneg %p128
        %s347 = sand.u32 %s148, 1
        %s348 = scalar_lea.sflag [#allocation5], %s347
        %s349 = sand.u32 %s148, 1
        %s350 = smul.addr %s349, 128
        %s351 = scalar_lea.vmem [#allocation4], %s350
        %p352 = pneg %p161
        %p353 = pneg %p158
        %s354 = sand.u32 %s178, 1
        %s355 = scalar_lea.sflag [#allocation7], %s354
        %s356 = sand.u32 %s178, 1
        %s357 = smul.addr %s356, 128
        %s358 = scalar_lea.vmem [#allocation6], %s357
        %p359 = pneg %p191
        %p360 = pneg %p188
        %p361 = pneg %p219
        %p362 = pneg %p216
        %p363 = scmp.lt.s32.totalorder %s35, 2
        %s364 = scalar_select %p363, %s35, 2
        %p365 = scmp.lt.s32.totalorder %s34, 0
        %s366 = scalar_select %p365, %s34, 0
        %s367 = sadd.s32 %s366, %s364
        %s368 = smul.addr %s367, 8
        %s369 = scalar_lea.vmem %s7, %s368
        %p370 = scmp.lt.s32.totalorder %s35, 2
        %s371 = scalar_select %p370, %s35, 2
        %s372 = smul.addr %s371, 6
        %s373 = smul.addr %s372, 8
        %s374 = scalar_lea.vmem %s2, %s373
        %p375 = scmp.lt.s32.totalorder %s34, 0
        %s376 = scalar_select %p375, %s34, 0
        %s377 = smul.addr %s376, 8
        %s378 = scalar_lea.vmem %s3, %s377
        %s379 = sld [smem:[#allocation3 + %s35]]
        %s380 = sld [smem:[#allocation3 + %s35]]
        %p381 = scmp.lt.s32.totalorder %s35, 2
        %s382 = scalar_select %p381, %s35, 2
        %p383 = scmp.lt.s32.totalorder %s34, 0
        %s384 = scalar_select %p383, %s34, 0
        %s385 = sadd.s32 %s384, %s382
        %s386 = smul.addr %s385, 8
        %s387 = scalar_lea.vmem %s7, %s386
        %v389 = vld [vmem:[%s374] sm:$0xff]
        %v390 = vld [vmem:[%s374 + $0x8] sm:$0xff]
        %v391 = vld [vmem:[%s374 + $0x10] sm:$0xff]
        %v392 = vld [vmem:[%s374 + $0x18] sm:$0xff]
        %v393 = vld [vmem:[%s374 + $0x20] sm:$0xff]
        %v394 = vld [vmem:[%s374 + $0x28] sm:$0xff]
        %v395 = vld [vmem:[%s1] ss:$2 sm:$0x3]
        %s396 = scalar_lea.vmem %s1, 1
        %v397 = vld [vmem:[%s396] ss:$2 sm:$0x3]
        %v399 = vlaneseq
        %v400 = vshrl.u32 %v399, 7
        %v401 = vsub.s32 0, %v400
        %v402 = vrot.slane %v395, %v401
        %v403 = vlaneseq
        %v404 = vshrl.u32 %v403, 7
        %v405 = vsub.s32 1, %v404
        %v406 = vrot.slane %v395, %v405
        %410 = vset.pattern.permute.xlu0 0
        %411 = vperm.xlu0 %410, %v389
        %v412 = vpop.permute.xlu0 %411
        %415 = vset.pattern.permute.xlu0 0
        %416 = vperm.xlu0 %415, %v390
        %v417 = vpop.permute.xlu0 %416
        %420 = vset.pattern.permute.xlu0 0
        %421 = vperm.xlu0 %420, %v391
        %v422 = vpop.permute.xlu0 %421
        %425 = vset.pattern.permute.xlu0 0
        %426 = vperm.xlu0 %425, %v392
        %v427 = vpop.permute.xlu0 %426
        %430 = vset.pattern.permute.xlu0 0
        %431 = vperm.xlu0 %430, %v393
        %v432 = vpop.permute.xlu0 %431
        %435 = vset.pattern.permute.xlu0 0
        %436 = vperm.xlu0 %435, %v394
        %v437 = vpop.permute.xlu0 %436
        %vm439 = vcmp.ge.f32.partialorder %v402, %v412
        %vm440 = vcmp.ge.f32.partialorder %v406, %v412
        %vm441 = vcmp.ge.f32.partialorder %v402, %v417
        %vm442 = vcmp.ge.f32.partialorder %v406, %v417
        %vm443 = vcmp.ge.f32.partialorder %v402, %v422
        %vm444 = vcmp.ge.f32.partialorder %v406, %v422
        %vm445 = vcmp.ge.f32.partialorder %v402, %v427
        %vm446 = vcmp.ge.f32.partialorder %v406, %v427
        %vm447 = vcmp.ge.f32.partialorder %v402, %v432
        %vm448 = vcmp.ge.f32.partialorder %v406, %v432
        %vm449 = vcmp.ge.f32.partialorder %v402, %v437
        %vm450 = vcmp.ge.f32.partialorder %v406, %v437
        %451 = vset.pattern.permute.xlu0 1
        %452 = vperm.xlu0 %451, %v389
        %v453 = vpop.permute.xlu0 %452
        %455 = vset.pattern.permute.xlu0 1
        %456 = vperm.xlu0 %455, %v390
        %v457 = vpop.permute.xlu0 %456
        %459 = vset.pattern.permute.xlu0 1
        %460 = vperm.xlu0 %459, %v391
        %v461 = vpop.permute.xlu0 %460
        %463 = vset.pattern.permute.xlu0 1
        %464 = vperm.xlu0 %463, %v392
        %v465 = vpop.permute.xlu0 %464
        %467 = vset.pattern.permute.xlu0 1
        %468 = vperm.xlu0 %467, %v393
        %v469 = vpop.permute.xlu0 %468
        %471 = vset.pattern.permute.xlu0 1
        %472 = vperm.xlu0 %471, %v394
        %v473 = vpop.permute.xlu0 %472
        %vm475 = vcmp.lt.f32.partialorder %v402, %v453
        %vm476 = vcmp.lt.f32.partialorder %v406, %v453
        %vm477 = vcmp.lt.f32.partialorder %v402, %v457
        %vm478 = vcmp.lt.f32.partialorder %v406, %v457
        %vm479 = vcmp.lt.f32.partialorder %v402, %v461
        %vm480 = vcmp.lt.f32.partialorder %v406, %v461
        %vm481 = vcmp.lt.f32.partialorder %v402, %v465
        %vm482 = vcmp.lt.f32.partialorder %v406, %v465
        %vm483 = vcmp.lt.f32.partialorder %v402, %v469
        %vm484 = vcmp.lt.f32.partialorder %v406, %v469
        %vm485 = vcmp.lt.f32.partialorder %v402, %v473
        %vm486 = vcmp.lt.f32.partialorder %v406, %v473
        %vm487 = vmand %vm439, %vm475
        %vm488 = vmand %vm440, %vm476
        %vm489 = vmand %vm441, %vm477
        %vm490 = vmand %vm442, %vm478
        %vm491 = vmand %vm443, %vm479
        %vm492 = vmand %vm444, %vm480
        %vm493 = vmand %vm445, %vm481
        %vm494 = vmand %vm446, %vm482
        %vm495 = vmand %vm447, %vm483
        %vm496 = vmand %vm448, %vm484
        %vm497 = vmand %vm449, %vm485
        %vm498 = vmand %vm450, %vm486
        %v500 = vlaneseq
        %v501 = vshrl.u32 %v500, 7
        %v502 = vsub.s32 0, %v501
        %v503 = vrot.slane %v397, %v502
        %v504 = vlaneseq
        %v505 = vshrl.u32 %v504, 7
        %v506 = vsub.s32 1, %v505
        %v507 = vrot.slane %v397, %v506
        %510 = vset.pattern.permute.xlu0 2
        %511 = vperm.xlu0 %510, %v389
        %v512 = vpop.permute.xlu0 %511
        %514 = vset.pattern.permute.xlu0 2
        %515 = vperm.xlu0 %514, %v390
        %v516 = vpop.permute.xlu0 %515
        %518 = vset.pattern.permute.xlu0 2
        %519 = vperm.xlu0 %518, %v391
        %v520 = vpop.permute.xlu0 %519
        %522 = vset.pattern.permute.xlu0 2
        %523 = vperm.xlu0 %522, %v392
        %v524 = vpop.permute.xlu0 %523
        %526 = vset.pattern.permute.xlu0 2
        %527 = vperm.xlu0 %526, %v393
        %v528 = vpop.permute.xlu0 %527
        %530 = vset.pattern.permute.xlu0 2
        %531 = vperm.xlu0 %530, %v394
        %v532 = vpop.permute.xlu0 %531
        %vm534 = vcmp.ge.f32.partialorder %v503, %v512
        %vm535 = vcmp.ge.f32.partialorder %v507, %v512
        %vm536 = vcmp.ge.f32.partialorder %v503, %v516
        %vm537 = vcmp.ge.f32.partialorder %v507, %v516
        %vm538 = vcmp.ge.f32.partialorder %v503, %v520
        %vm539 = vcmp.ge.f32.partialorder %v507, %v520
        %vm540 = vcmp.ge.f32.partialorder %v503, %v524
        %vm541 = vcmp.ge.f32.partialorder %v507, %v524
        %vm542 = vcmp.ge.f32.partialorder %v503, %v528
        %vm543 = vcmp.ge.f32.partialorder %v507, %v528
        %vm544 = vcmp.ge.f32.partialorder %v503, %v532
        %vm545 = vcmp.ge.f32.partialorder %v507, %v532
        %vm546 = vmand %vm487, %vm534
        %vm547 = vmand %vm488, %vm535
        %vm548 = vmand %vm489, %vm536
        %vm549 = vmand %vm490, %vm537
        %vm550 = vmand %vm491, %vm538
        %vm551 = vmand %vm492, %vm539
        %vm552 = vmand %vm493, %vm540
        %vm553 = vmand %vm494, %vm541
        %vm554 = vmand %vm495, %vm542
        %vm555 = vmand %vm496, %vm543
        %vm556 = vmand %vm497, %vm544
        %vm557 = vmand %vm498, %vm545
        %558 = vset.pattern.permute.xlu0 3
        %559 = vperm.xlu0 %558, %v389
        %v560 = vpop.permute.xlu0 %559
        %562 = vset.pattern.permute.xlu0 3
        %563 = vperm.xlu0 %562, %v390
        %v564 = vpop.permute.xlu0 %563
        %566 = vset.pattern.permute.xlu0 3
        %567 = vperm.xlu0 %566, %v391
        %v568 = vpop.permute.xlu0 %567
        %570 = vset.pattern.permute.xlu0 3
        %571 = vperm.xlu0 %570, %v392
        %v572 = vpop.permute.xlu0 %571
        %574 = vset.pattern.permute.xlu0 3
        %575 = vperm.xlu0 %574, %v393
        %v576 = vpop.permute.xlu0 %575
        %578 = vset.pattern.permute.xlu0 3
        %579 = vperm.xlu0 %578, %v394
        %v580 = vpop.permute.xlu0 %579
        %vm582 = vcmp.lt.f32.partialorder %v503, %v560
        %vm583 = vcmp.lt.f32.partialorder %v507, %v560
        %vm584 = vcmp.lt.f32.partialorder %v503, %v564
        %vm585 = vcmp.lt.f32.partialorder %v507, %v564
        %vm586 = vcmp.lt.f32.partialorder %v503, %v568
        %vm587 = vcmp.lt.f32.partialorder %v507, %v568
        %vm588 = vcmp.lt.f32.partialorder %v503, %v572
        %vm589 = vcmp.lt.f32.partialorder %v507, %v572
        %vm590 = vcmp.lt.f32.partialorder %v503, %v576
        %vm591 = vcmp.lt.f32.partialorder %v507, %v576
        %vm592 = vcmp.lt.f32.partialorder %v503, %v580
        %vm593 = vcmp.lt.f32.partialorder %v507, %v580
        %vm594 = vmand %vm546, %vm582
        %vm595 = vmand %vm547, %vm583
        %vm596 = vmand %vm548, %vm584
        %vm597 = vmand %vm549, %vm585
        %vm598 = vmand %vm550, %vm586
        %vm599 = vmand %vm551, %vm587
        %vm600 = vmand %vm552, %vm588
        %vm601 = vmand %vm553, %vm589
        %vm602 = vmand %vm554, %vm590
        %vm603 = vmand %vm555, %vm591
        %vm604 = vmand %vm556, %vm592
        %vm605 = vmand %vm557, %vm593
        %v606 = vsel %vm594, 1, 0
        %v607 = vsel %vm595, 1, 0
        %v608 = vsel %vm596, 1, 0
        %v609 = vsel %vm597, 1, 0
        %v610 = vsel %vm598, 1, 0
        %v611 = vsel %vm599, 1, 0
        %v612 = vsel %vm600, 1, 0
        %v613 = vsel %vm601, 1, 0
        %v614 = vsel %vm602, 1, 0
        %v615 = vsel %vm603, 1, 0
        %v616 = vsel %vm604, 1, 0
        %v617 = vsel %vm605, 1, 0
        %v618 = vcvt.s32.f32 %v606
        %v619 = vcvt.s32.f32 %v607
        %v620 = vcvt.s32.f32 %v608
        %v621 = vcvt.s32.f32 %v609
        %v622 = vcvt.s32.f32 %v610
        %v623 = vcvt.s32.f32 %v611
        %v624 = vcvt.s32.f32 %v612
        %v625 = vcvt.s32.f32 %v613
        %v626 = vcvt.s32.f32 %v614
        %v627 = vcvt.s32.f32 %v615
        %v628 = vcvt.s32.f32 %v616
        %v629 = vcvt.s32.f32 %v617
        %v630 = vpack.c.bf16 %v620, %v618
        %v631 = vpack.c.bf16 %v621, %v619
        %v632 = vpack.c.bf16 %v624, %v622
        %v633 = vpack.c.bf16 %v625, %v623
        %v634 = vpack.c.bf16 %v628, %v626
        %v635 = vpack.c.bf16 %v629, %v627
        %v636 = vld [vmem:[%s316] sm:$0xf]
        %v637 = vld [vmem:[%s316 + $0x4] sm:$0xf]
        %v638 = vld [vmem:[%s316 + $0x8] sm:$0xf]
        %v639 = vld [vmem:[%s316 + $0xc] sm:$0xf]
        %v640 = vld [vmem:[%s316 + $0x10] sm:$0xf]
        %v641 = vld [vmem:[%s316 + $0x14] sm:$0xf]
        %v642 = vld [vmem:[%s316 + $0x18] sm:$0xf]
        %v643 = vld [vmem:[%s316 + $0x1c] sm:$0xf]
        %v644 = vld [vmem:[%s316 + $0x20] sm:$0xf]
        %v645 = vld [vmem:[%s316 + $0x24] sm:$0xf]
        %v646 = vld [vmem:[%s316 + $0x28] sm:$0xf]
        %v647 = vld [vmem:[%s316 + $0x2c] sm:$0xf]
        %v648 = vld [vmem:[%s316 + $0x30] sm:$0xf]
        %v649 = vld [vmem:[%s316 + $0x34] sm:$0xf]
        %v650 = vld [vmem:[%s316 + $0x38] sm:$0xf]
        %v651 = vld [vmem:[%s316 + $0x3c] sm:$0xf]
        %v652 = vld [vmem:[%s316 + $0x40] sm:$0xf]
        %v653 = vld [vmem:[%s316 + $0x44] sm:$0xf]
        %v654 = vld [vmem:[%s316 + $0x48] sm:$0xf]
        %v655 = vld [vmem:[%s316 + $0x4c] sm:$0xf]
        %v656 = vld [vmem:[%s316 + $0x50] sm:$0xf]
        %v657 = vld [vmem:[%s316 + $0x54] sm:$0xf]
        %v658 = vld [vmem:[%s316 + $0x58] sm:$0xf]
        %v659 = vld [vmem:[%s316 + $0x5c] sm:$0xf]
        %v660 = vld [vmem:[%s316 + $0x60] sm:$0xf]
        %v661 = vld [vmem:[%s316 + $0x64] sm:$0xf]
        %v662 = vld [vmem:[%s316 + $0x68] sm:$0xf]
        %v663 = vld [vmem:[%s316 + $0x6c] sm:$0xf]
        %v664 = vld [vmem:[%s316 + $0x70] sm:$0xf]
        %v665 = vld [vmem:[%s316 + $0x74] sm:$0xf]
        %v666 = vld [vmem:[%s316 + $0x78] sm:$0xf]
        %v667 = vld [vmem:[%s316 + $0x7c] sm:$0xf]
        %v668 = vld [vmem:[%s325] sm:$0xf]
        %v669 = vld [vmem:[%s325 + $0x4] sm:$0xf]
        %v670 = vld [vmem:[%s325 + $0x8] sm:$0xf]
        %v671 = vld [vmem:[%s325 + $0xc] sm:$0xf]
        %v672 = vld [vmem:[%s325 + $0x10] sm:$0xf]
        %v673 = vld [vmem:[%s325 + $0x14] sm:$0xf]
        %v674 = vld [vmem:[%s325 + $0x18] sm:$0xf]
        %v675 = vld [vmem:[%s325 + $0x1c] sm:$0xf]
        %v676 = vld [vmem:[%s325 + $0x20] sm:$0xf]
        %v677 = vld [vmem:[%s325 + $0x24] sm:$0xf]
        %v678 = vld [vmem:[%s325 + $0x28] sm:$0xf]
        %v679 = vld [vmem:[%s325 + $0x2c] sm:$0xf]
        %v680 = vld [vmem:[%s325 + $0x30] sm:$0xf]
        %v681 = vld [vmem:[%s325 + $0x34] sm:$0xf]
        %v682 = vld [vmem:[%s325 + $0x38] sm:$0xf]
        %v683 = vld [vmem:[%s325 + $0x3c] sm:$0xf]
        %v684 = vld [vmem:[%s325 + $0x40] sm:$0xf]
        %v685 = vld [vmem:[%s325 + $0x44] sm:$0xf]
        %v686 = vld [vmem:[%s325 + $0x48] sm:$0xf]
        %v687 = vld [vmem:[%s325 + $0x4c] sm:$0xf]
        %v688 = vld [vmem:[%s325 + $0x50] sm:$0xf]
        %v689 = vld [vmem:[%s325 + $0x54] sm:$0xf]
        %v690 = vld [vmem:[%s325 + $0x58] sm:$0xf]
        %v691 = vld [vmem:[%s325 + $0x5c] sm:$0xf]
        %v692 = vld [vmem:[%s325 + $0x60] sm:$0xf]
        %v693 = vld [vmem:[%s325 + $0x64] sm:$0xf]
        %v694 = vld [vmem:[%s325 + $0x68] sm:$0xf]
        %v695 = vld [vmem:[%s325 + $0x6c] sm:$0xf]
        %v696 = vld [vmem:[%s325 + $0x70] sm:$0xf]
        %v697 = vld [vmem:[%s325 + $0x74] sm:$0xf]
        %v698 = vld [vmem:[%s325 + $0x78] sm:$0xf]
        %v699 = vld [vmem:[%s325 + $0x7c] sm:$0xf]
        %v732 = vunpack.c.l.b16 %v668
        %v733 = vunpack.c.l.b16 %v669
        %v734 = vunpack.c.l.b16 %v670
        %v735 = vunpack.c.l.b16 %v671
        %v736 = vunpack.c.l.b16 %v672
        %v737 = vunpack.c.l.b16 %v673
        %v738 = vunpack.c.l.b16 %v674
        %v739 = vunpack.c.l.b16 %v675
        %v740 = vunpack.c.l.b16 %v676
        %v741 = vunpack.c.l.b16 %v677
        %v742 = vunpack.c.l.b16 %v678
        %v743 = vunpack.c.l.b16 %v679
        %v744 = vunpack.c.l.b16 %v680
        %v745 = vunpack.c.l.b16 %v681
        %v746 = vunpack.c.l.b16 %v682
        %v747 = vunpack.c.l.b16 %v683
        %v748 = vunpack.c.l.b16 %v684
        %v749 = vunpack.c.l.b16 %v685
        %v750 = vunpack.c.l.b16 %v686
        %v751 = vunpack.c.l.b16 %v687
        %v752 = vunpack.c.l.b16 %v688
        %v753 = vunpack.c.l.b16 %v689
        %v754 = vunpack.c.l.b16 %v690
        %v755 = vunpack.c.l.b16 %v691
        %v756 = vunpack.c.l.b16 %v692
        %v757 = vunpack.c.l.b16 %v693
        %v758 = vunpack.c.l.b16 %v694
        %v759 = vunpack.c.l.b16 %v695
        %v760 = vunpack.c.l.b16 %v696
        %v761 = vunpack.c.l.b16 %v697
        %v762 = vunpack.c.l.b16 %v698
        %v763 = vunpack.c.l.b16 %v699
        %v764 = vpack.c.b16 %v733, %v732
        %v765 = vpack.c.b16 %v735, %v734
        %v766 = vpack.c.b16 %v737, %v736
        %v767 = vpack.c.b16 %v739, %v738
        %v768 = vpack.c.b16 %v741, %v740
        %v769 = vpack.c.b16 %v743, %v742
        %v770 = vpack.c.b16 %v745, %v744
        %v771 = vpack.c.b16 %v747, %v746
        %v772 = vpack.c.b16 %v749, %v748
        %v773 = vpack.c.b16 %v751, %v750
        %v774 = vpack.c.b16 %v753, %v752
        %v775 = vpack.c.b16 %v755, %v754
        %v776 = vpack.c.b16 %v757, %v756
        %v777 = vpack.c.b16 %v759, %v758
        %v778 = vpack.c.b16 %v761, %v760
        %v779 = vpack.c.b16 %v763, %v762
        %796 = vmatprep.subr.bf16.mxu0 0
        %797 = vmatpush1.bf16.msra.mxu0 %v764
        %798 = vmatprep.subr.bf16.mxu0 0
        %799 = vmatpush1.bf16.msra.mxu0 %v765
        %800 = vmatprep.subr.bf16.mxu0 0
        %801 = vmatpush1.bf16.msra.mxu0 %v766
        %802 = vmatprep.subr.bf16.mxu0 0
        %803 = vmatpush1.bf16.msra.mxu0 %v767
        %804 = vmatprep.subr.bf16.mxu0 0
        %805 = vmatpush1.bf16.msra.mxu0 %v768
        %806 = vmatprep.subr.bf16.mxu0 0
        %807 = vmatpush1.bf16.msra.mxu0 %v769
        %808 = vmatprep.subr.bf16.mxu0 0
        %809 = vmatpush1.bf16.msra.mxu0 %v770
        %810 = vmatprep.subr.bf16.mxu0 0
        %811 = vmatpush1.bf16.msra.mxu0 %v771
        %812 = vmatprep.subr.bf16.mxu0 0
        %813 = vmatpush1.bf16.msra.mxu0 %v772
        %814 = vmatprep.subr.bf16.mxu0 0
        %815 = vmatpush1.bf16.msra.mxu0 %v773
        %816 = vmatprep.subr.bf16.mxu0 0
        %817 = vmatpush1.bf16.msra.mxu0 %v774
        %818 = vmatprep.subr.bf16.mxu0 0
        %819 = vmatpush1.bf16.msra.mxu0 %v775
        %820 = vmatprep.subr.bf16.mxu0 0
        %821 = vmatpush1.bf16.msra.mxu0 %v776
        %822 = vmatprep.subr.bf16.mxu0 0
        %823 = vmatpush1.bf16.msra.mxu0 %v777
        %824 = vmatprep.subr.bf16.mxu0 0
        %825 = vmatpush1.bf16.msra.mxu0 %v778
        %826 = vmatprep.subr.bf16.mxu0 0
        %827 = vmatpush1.bf16.msra.mxu0 %v779
        %828 = vmatprep.mubr.bf16.mxu0 %v631
        %829 = vmatmul.mubr.bf16.gmra.mrb[0].mxu0 %v630
        %v830 = vpop.f32.mrb[0].mxu0
        %v831 = vadd.f32 0.0, %v830
        %v832 = vpop.f32.mrb[0].mxu0
        %v833 = vpop.f32.mrb[0].mxu0
        %v834 = vadd.f32 0.0, %v833
        %v835 = vpop.f32.mrb[0].mxu0
        %836 = vmatprep.mubr.bf16.mxu0 %v633
        %837 = vmatmul.mubr.bf16.gmra.mrb[0].mxu0 %v632
        %v838 = vpop.f32.mrb[0].mxu0
        %v839 = vadd.f32 0.0, %v838
        %v840 = vpop.f32.mrb[0].mxu0
        %v841 = vpop.f32.mrb[0].mxu0
        %v842 = vadd.f32 0.0, %v841
        %v843 = vpop.f32.mrb[0].mxu0
        %844 = vmatprep.mubr.bf16.mxu0 %v635
        %845 = vmatmul.mubr.bf16.gmra.mrb[0].mxu0 %v634
        %v846 = vpop.f32.mrb[0].mxu0
        %v847 = vadd.f32 0.0, %v846
        %v848 = vpop.f32.mrb[0].mxu0
        %v849 = vpop.f32.mrb[0].mxu0
        %v850 = vadd.f32 0.0, %v849
        %v851 = vpop.f32.mrb[0].mxu0
        %852 = vdwg.mxu0
        %v885 = vunpack.c.l.b16 %v636
        %v886 = vunpack.c.l.b16 %v637
        %v887 = vunpack.c.l.b16 %v638
        %v888 = vunpack.c.l.b16 %v639
        %v889 = vunpack.c.l.b16 %v640
        %v890 = vunpack.c.l.b16 %v641
        %v891 = vunpack.c.l.b16 %v642
        %v892 = vunpack.c.l.b16 %v643
        %v893 = vunpack.c.l.b16 %v644
        %v894 = vunpack.c.l.b16 %v645
        %v895 = vunpack.c.l.b16 %v646
        %v896 = vunpack.c.l.b16 %v647
        %v897 = vunpack.c.l.b16 %v648
        %v898 = vunpack.c.l.b16 %v649
        %v899 = vunpack.c.l.b16 %v650
        %v900 = vunpack.c.l.b16 %v651
        %v901 = vunpack.c.l.b16 %v652
        %v902 = vunpack.c.l.b16 %v653
        %v903 = vunpack.c.l.b16 %v654
        %v904 = vunpack.c.l.b16 %v655
        %v905 = vunpack.c.l.b16 %v656
        %v906 = vunpack.c.l.b16 %v657
        %v907 = vunpack.c.l.b16 %v658
        %v908 = vunpack.c.l.b16 %v659
        %v909 = vunpack.c.l.b16 %v660
        %v910 = vunpack.c.l.b16 %v661
        %v911 = vunpack.c.l.b16 %v662
        %v912 = vunpack.c.l.b16 %v663
        %v913 = vunpack.c.l.b16 %v664
        %v914 = vunpack.c.l.b16 %v665
        %v915 = vunpack.c.l.b16 %v666
        %v916 = vunpack.c.l.b16 %v667
        %v917 = vpack.c.b16 %v886, %v885
        %v918 = vpack.c.b16 %v888, %v887
        %v919 = vpack.c.b16 %v890, %v889
        %v920 = vpack.c.b16 %v892, %v891
        %v921 = vpack.c.b16 %v894, %v893
        %v922 = vpack.c.b16 %v896, %v895
        %v923 = vpack.c.b16 %v898, %v897
        %v924 = vpack.c.b16 %v900, %v899
        %v925 = vpack.c.b16 %v902, %v901
        %v926 = vpack.c.b16 %v904, %v903
        %v927 = vpack.c.b16 %v906, %v905
        %v928 = vpack.c.b16 %v908, %v907
        %v929 = vpack.c.b16 %v910, %v909
        %v930 = vpack.c.b16 %v912, %v911
        %v931 = vpack.c.b16 %v914, %v913
        %v932 = vpack.c.b16 %v916, %v915
        %949 = vmatprep.subr.bf16.mxu0 0
        %950 = vmatpush1.bf16.msra.mxu0 %v917
        %951 = vmatprep.subr.bf16.mxu0 0
        %952 = vmatpush1.bf16.msra.mxu0 %v918
        %953 = vmatprep.subr.bf16.mxu0 0
        %954 = vmatpush1.bf16.msra.mxu0 %v919
        %955 = vmatprep.subr.bf16.mxu0 0
        %956 = vmatpush1.bf16.msra.mxu0 %v920
        %957 = vmatprep.subr.bf16.mxu0 0
        %958 = vmatpush1.bf16.msra.mxu0 %v921
        %959 = vmatprep.subr.bf16.mxu0 0
        %960 = vmatpush1.bf16.msra.mxu0 %v922
        %961 = vmatprep.subr.bf16.mxu0 0
        %962 = vmatpush1.bf16.msra.mxu0 %v923
        %963 = vmatprep.subr.bf16.mxu0 0
        %964 = vmatpush1.bf16.msra.mxu0 %v924
        %965 = vmatprep.subr.bf16.mxu0 0
        %966 = vmatpush1.bf16.msra.mxu0 %v925
        %967 = vmatprep.subr.bf16.mxu0 0
        %968 = vmatpush1.bf16.msra.mxu0 %v926
        %969 = vmatprep.subr.bf16.mxu0 0
        %970 = vmatpush1.bf16.msra.mxu0 %v927
        %971 = vmatprep.subr.bf16.mxu0 0
        %972 = vmatpush1.bf16.msra.mxu0 %v928
        %973 = vmatprep.subr.bf16.mxu0 0
        %974 = vmatpush1.bf16.msra.mxu0 %v929
        %975 = vmatprep.subr.bf16.mxu0 0
        %976 = vmatpush1.bf16.msra.mxu0 %v930
        %977 = vmatprep.subr.bf16.mxu0 0
        %978 = vmatpush1.bf16.msra.mxu0 %v931
        %979 = vmatprep.subr.bf16.mxu0 0
        %980 = vmatpush1.bf16.msra.mxu0 %v932
        %981 = vmatprep.mubr.bf16.mxu0 %v631
        %982 = vmatmul.mubr.bf16.gmra.mrb[0].mxu0 %v630
        %v983 = vpop.f32.mrb[0].mxu0
        %v984 = vadd.f32 %v831, %v983
        %v985 = vpop.f32.mrb[0].mxu0
        %v986 = vpop.f32.mrb[0].mxu0
        %v987 = vadd.f32 %v834, %v986
        %v988 = vpop.f32.mrb[0].mxu0
        %989 = vmatprep.mubr.bf16.mxu0 %v633
        %990 = vmatmul.mubr.bf16.gmra.mrb[0].mxu0 %v632
        %v991 = vpop.f32.mrb[0].mxu0
        %v992 = vadd.f32 %v839, %v991
        %v993 = vpop.f32.mrb[0].mxu0
        %v994 = vpop.f32.mrb[0].mxu0
        %v995 = vadd.f32 %v842, %v994
        %v996 = vpop.f32.mrb[0].mxu0
        %997 = vmatprep.mubr.bf16.mxu0 %v635
        %998 = vmatmul.mubr.bf16.gmra.mrb[0].mxu0 %v634
        %v999 = vpop.f32.mrb[0].mxu0
        %v1000 = vadd.f32 %v847, %v999
        %v1001 = vpop.f32.mrb[0].mxu0
        %v1002 = vpop.f32.mrb[0].mxu0
        %v1003 = vadd.f32 %v850, %v1002
        %v1004 = vpop.f32.mrb[0].mxu0
        %1005 = vdwg.mxu0
        %v1006 = vld [vmem:[%s378] sm:$0xff]
        %v1007 = vld [vmem:[%s378 + $0x8] sm:$0xff]
        %v1008 = vld [vmem:[%s378 + $0x10] sm:$0xff]
        %v1009 = vld [vmem:[%s378 + $0x18] sm:$0xff]
        %v1010 = vld [vmem:[%s378 + $0x20] sm:$0xff]
        %v1011 = vld [vmem:[%s378 + $0x28] sm:$0xff]
        %1012 = vset.pattern.permute.xlu0 4
        %1013 = vperm.xlu0 %1012, %v389
        %v1014 = vpop.permute.xlu0 %1013
        %1016 = vset.pattern.permute.xlu0 4
        %1017 = vperm.xlu0 %1016, %v390
        %v1018 = vpop.permute.xlu0 %1017
        %1020 = vset.pattern.permute.xlu0 4
        %1021 = vperm.xlu0 %1020, %v391
        %v1022 = vpop.permute.xlu0 %1021
        %1024 = vset.pattern.permute.xlu0 4
        %1025 = vperm.xlu0 %1024, %v392
        %v1026 = vpop.permute.xlu0 %1025
        %1028 = vset.pattern.permute.xlu0 4
        %1029 = vperm.xlu0 %1028, %v393
        %v1030 = vpop.permute.xlu0 %1029
        %1032 = vset.pattern.permute.xlu0 4
        %1033 = vperm.xlu0 %1032, %v394
        %v1034 = vpop.permute.xlu0 %1033
        %v1036 = vmul.f32 %v1006, %v1014
        %v1037 = vmul.f32 %v1007, %v1018
        %v1038 = vmul.f32 %v1008, %v1022
        %v1039 = vmul.f32 %v1009, %v1026
        %v1040 = vmul.f32 %v1010, %v1030
        %v1041 = vmul.f32 %v1011, %v1034
        %v1042 = vmul.f32 %v984, %v1036
        %v1043 = vmul.f32 %v987, %v1037
        %v1044 = vmul.f32 %v992, %v1038
        %v1045 = vmul.f32 %v995, %v1039
        %v1046 = vmul.f32 %v1000, %v1040
        %v1047 = vmul.f32 %v1003, %v1041
        %v1048 = vld [vmem:[%s4] sm:$0x1f]
        %vm1049 = vcmask 392192
        %v1051 = vsel %vm1049, %v1048, 0
        %1053 = vmatprep.subr.mxu0 0.0
        %v1054 = vand.u32 %v1042, 4294901760
        %1055 = vmatpush1.msra.mxu0 %v1054
        %1056 = vmatprep.subr.mxu0 0.0
        %v1057 = vand.u32 %v1043, 4294901760
        %1058 = vmatpush1.msra.mxu0 %v1057
        %1059 = vmatprep.subr.mxu0 0.0
        %v1060 = vand.u32 %v1044, 4294901760
        %1061 = vmatpush1.msra.mxu0 %v1060
        %1062 = vmatprep.subr.mxu0 0.0
        %v1063 = vand.u32 %v1045, 4294901760
        %1064 = vmatpush1.msra.mxu0 %v1063
        %1065 = vmatprep.subr.mxu0 0.0
        %v1066 = vand.u32 %v1046, 4294901760
        %1067 = vmatpush1.msra.mxu0 %v1066
        %1068 = vmatprep.subr.mxu0 0.0
        %v1069 = vand.u32 %v1047, 4294901760
        %1070 = vmatpush1.msra.mxu0 %v1069
        %1071 = vmatprep.subr.mxu0 0.0
        %1072 = vmatpush1.msra.mxu0 0.0
        %1073 = vmatprep.subr.mxu0 0.0
        %1074 = vmatpush1.msra.mxu0 0.0
        %1075 = vmatprep.subr.mxu0 0.0
        %1076 = vmatpush1.msra.mxu0 0.0
        %1077 = vmatprep.subr.mxu0 0.0
        %1078 = vmatpush1.msra.mxu0 0.0
        %1079 = vmatprep.subr.mxu0 0.0
        %1080 = vmatpush1.msra.mxu0 0.0
        %1081 = vmatprep.subr.mxu0 0.0
        %1082 = vmatpush1.msra.mxu0 0.0
        %1083 = vmatprep.subr.mxu0 0.0
        %1084 = vmatpush1.msra.mxu0 0.0
        %1085 = vmatprep.subr.mxu0 0.0
        %1086 = vmatpush1.msra.mxu0 0.0
        %1087 = vmatprep.subr.mxu0 0.0
        %1088 = vmatpush1.msra.mxu0 0.0
        %1089 = vmatprep.subr.mxu0 0.0
        %1090 = vmatpush1.msra.mxu0 0.0
        %1091 = vmatprep.subr.mxu0 0.0
        %1092 = vmatpush1.msra.mxu0 0.0
        %1093 = vmatprep.subr.mxu0 0.0
        %1094 = vmatpush1.msra.mxu0 0.0
        %1095 = vmatprep.subr.mxu0 0.0
        %1096 = vmatpush1.msra.mxu0 0.0
        %1097 = vmatprep.subr.mxu0 0.0
        %1098 = vmatpush1.msra.mxu0 0.0
        %1099 = vmatprep.subr.mxu0 0.0
        %1100 = vmatpush1.msra.mxu0 0.0
        %1101 = vmatprep.subr.mxu0 0.0
        %1102 = vmatpush1.msra.mxu0 0.0
        %1103 = vmatprep.subr.mxu0 0.0
        %1104 = vmatpush1.msra.mxu0 0.0
        %1105 = vmatprep.subr.mxu0 0.0
        %1106 = vmatpush1.msra.mxu0 0.0
        %1107 = vmatprep.subr.mxu0 0.0
        %1108 = vmatpush1.msra.mxu0 0.0
        %1109 = vmatprep.subr.mxu0 0.0
        %1110 = vmatpush1.msra.mxu0 0.0
        %1111 = vmatprep.subr.mxu0 0.0
        %1112 = vmatpush1.msra.mxu0 0.0
        %1113 = vmatprep.subr.mxu0 0.0
        %1114 = vmatpush1.msra.mxu0 0.0
        %1115 = vmatprep.subr.mxu0 0.0
        %1116 = vmatpush1.msra.mxu0 0.0
        %1117 = vmatprep.subr.mxu0 0.0
        %1118 = vmatpush1.msra.mxu0 0.0
        %1119 = vmatprep.subr.mxu0 0.0
        %1120 = vmatpush1.msra.mxu0 0.0
        %1121 = vmatprep.subr.mxu0 0.0
        %1122 = vmatpush1.msra.mxu0 0.0
        %1123 = vmatprep.mubr.f32.mxu0 0.0
        %v1124 = vand.u32 %v1051, 4294901760
        %v1125 = vsub.f32 %v1051, %v1124
        %v1126 = vand.u32 %v1125, 4294901760
        %v1127 = vsub.f32 %v1125, %v1126
        %v1128 = vand.u32 %v1127, 4294901760
        %1129 = vmatmul.mubr.f32.gmra.mrb[0].mxu0 %v1128
        %v1130 = vpop.f32.mrb[0].mxu0
        %v1131 = vadd.f32 0.0, %v1130
        %v1132 = vpop.f32.mrb[0].mxu0
        %1133 = vdwg.mxu0
        %1134 = vmatprep.subr.mxu0 0.0
        %v1135 = vand.u32 %v1042, 4294901760
        %v1136 = vsub.f32 %v1042, %v1135
        %v1137 = vand.u32 %v1136, 4294901760
        %v1138 = vsub.f32 %v1136, %v1137
        %v1139 = vand.u32 %v1138, 4294901760
        %1140 = vmatpush1.msra.mxu0 %v1139
        %1141 = vmatprep.subr.mxu0 0.0
        %v1142 = vand.u32 %v1043, 4294901760
        %v1143 = vsub.f32 %v1043, %v1142
        %v1144 = vand.u32 %v1143, 4294901760
        %v1145 = vsub.f32 %v1143, %v1144
        %v1146 = vand.u32 %v1145, 4294901760
        %1147 = vmatpush1.msra.mxu0 %v1146
        %1148 = vmatprep.subr.mxu0 0.0
        %v1149 = vand.u32 %v1044, 4294901760
        %v1150 = vsub.f32 %v1044, %v1149
        %v1151 = vand.u32 %v1150, 4294901760
        %v1152 = vsub.f32 %v1150, %v1151
        %v1153 = vand.u32 %v1152, 4294901760
        %1154 = vmatpush1.msra.mxu0 %v1153
        %1155 = vmatprep.subr.mxu0 0.0
        %v1156 = vand.u32 %v1045, 4294901760
        %v1157 = vsub.f32 %v1045, %v1156
        %v1158 = vand.u32 %v1157, 4294901760
        %v1159 = vsub.f32 %v1157, %v1158
        %v1160 = vand.u32 %v1159, 4294901760
        %1161 = vmatpush1.msra.mxu0 %v1160
        %1162 = vmatprep.subr.mxu0 0.0
        %v1163 = vand.u32 %v1046, 4294901760
        %v1164 = vsub.f32 %v1046, %v1163
        %v1165 = vand.u32 %v1164, 4294901760
        %v1166 = vsub.f32 %v1164, %v1165
        %v1167 = vand.u32 %v1166, 4294901760
        %1168 = vmatpush1.msra.mxu0 %v1167
        %1169 = vmatprep.subr.mxu0 0.0
        %v1170 = vand.u32 %v1047, 4294901760
        %v1171 = vsub.f32 %v1047, %v1170
        %v1172 = vand.u32 %v1171, 4294901760
        %v1173 = vsub.f32 %v1171, %v1172
        %v1174 = vand.u32 %v1173, 4294901760
        %1175 = vmatpush1.msra.mxu0 %v1174
        %1176 = vmatprep.subr.mxu0 0.0
        %1177 = vmatpush1.msra.mxu0 0.0
        %1178 = vmatprep.subr.mxu0 0.0
        %1179 = vmatpush1.msra.mxu0 0.0
        %1180 = vmatprep.subr.mxu0 0.0
        %1181 = vmatpush1.msra.mxu0 0.0
        %1182 = vmatprep.subr.mxu0 0.0
        %1183 = vmatpush1.msra.mxu0 0.0
        %1184 = vmatprep.subr.mxu0 0.0
        %1185 = vmatpush1.msra.mxu0 0.0
        %1186 = vmatprep.subr.mxu0 0.0
        %1187 = vmatpush1.msra.mxu0 0.0
        %1188 = vmatprep.subr.mxu0 0.0
        %1189 = vmatpush1.msra.mxu0 0.0
        %1190 = vmatprep.subr.mxu0 0.0
        %1191 = vmatpush1.msra.mxu0 0.0
        %1192 = vmatprep.subr.mxu0 0.0
        %1193 = vmatpush1.msra.mxu0 0.0
        %1194 = vmatprep.subr.mxu0 0.0
        %1195 = vmatpush1.msra.mxu0 0.0
        %1196 = vmatprep.subr.mxu0 0.0
        %1197 = vmatpush1.msra.mxu0 0.0
        %1198 = vmatprep.subr.mxu0 0.0
        %1199 = vmatpush1.msra.mxu0 0.0
        %1200 = vmatprep.subr.mxu0 0.0
        %1201 = vmatpush1.msra.mxu0 0.0
        %1202 = vmatprep.subr.mxu0 0.0
        %1203 = vmatpush1.msra.mxu0 0.0
        %1204 = vmatprep.subr.mxu0 0.0
        %1205 = vmatpush1.msra.mxu0 0.0
        %1206 = vmatprep.subr.mxu0 0.0
        %1207 = vmatpush1.msra.mxu0 0.0
        %1208 = vmatprep.subr.mxu0 0.0
        %1209 = vmatpush1.msra.mxu0 0.0
        %1210 = vmatprep.subr.mxu0 0.0
        %1211 = vmatpush1.msra.mxu0 0.0
        %1212 = vmatprep.subr.mxu0 0.0
        %1213 = vmatpush1.msra.mxu0 0.0
        %1214 = vmatprep.subr.mxu0 0.0
        %1215 = vmatpush1.msra.mxu0 0.0
        %1216 = vmatprep.subr.mxu0 0.0
        %1217 = vmatpush1.msra.mxu0 0.0
        %1218 = vmatprep.subr.mxu0 0.0
        %1219 = vmatpush1.msra.mxu0 0.0
        %1220 = vmatprep.subr.mxu0 0.0
        %1221 = vmatpush1.msra.mxu0 0.0
        %1222 = vmatprep.subr.mxu0 0.0
        %1223 = vmatpush1.msra.mxu0 0.0
        %1224 = vmatprep.subr.mxu0 0.0
        %1225 = vmatpush1.msra.mxu0 0.0
        %1226 = vmatprep.subr.mxu0 0.0
        %1227 = vmatpush1.msra.mxu0 0.0
        %1228 = vmatprep.mubr.f32.mxu0 0.0
        %v1229 = vand.u32 %v1051, 4294901760
        %1230 = vmatmul.mubr.f32.gmra.mrb[0].mxu0 %v1229
        %v1231 = vpop.f32.mrb[0].mxu0
        %v1232 = vadd.f32 %v1131, %v1231
        %v1233 = vpop.f32.mrb[0].mxu0
        %1234 = vdwg.mxu0
        %1235 = vmatprep.subr.mxu0 0.0
        %v1236 = vand.u32 %v1042, 4294901760
        %v1237 = vsub.f32 %v1042, %v1236
        %1238 = vmatpush1.msra.mxu0 %v1237
        %1239 = vmatprep.subr.mxu0 0.0
        %v1240 = vand.u32 %v1043, 4294901760
        %v1241 = vsub.f32 %v1043, %v1240
        %1242 = vmatpush1.msra.mxu0 %v1241
        %1243 = vmatprep.subr.mxu0 0.0
        %v1244 = vand.u32 %v1044, 4294901760
        %v1245 = vsub.f32 %v1044, %v1244
        %1246 = vmatpush1.msra.mxu0 %v1245
        %1247 = vmatprep.subr.mxu0 0.0
        %v1248 = vand.u32 %v1045, 4294901760
        %v1249 = vsub.f32 %v1045, %v1248
        %1250 = vmatpush1.msra.mxu0 %v1249
        %1251 = vmatprep.subr.mxu0 0.0
        %v1252 = vand.u32 %v1046, 4294901760
        %v1253 = vsub.f32 %v1046, %v1252
        %1254 = vmatpush1.msra.mxu0 %v1253
        %1255 = vmatprep.subr.mxu0 0.0
        %v1256 = vand.u32 %v1047, 4294901760
        %v1257 = vsub.f32 %v1047, %v1256
        %1258 = vmatpush1.msra.mxu0 %v1257
        %1259 = vmatprep.subr.mxu0 0.0
        %1260 = vmatpush1.msra.mxu0 0.0
        %1261 = vmatprep.subr.mxu0 0.0
        %1262 = vmatpush1.msra.mxu0 0.0
        %1263 = vmatprep.subr.mxu0 0.0
        %1264 = vmatpush1.msra.mxu0 0.0
        %1265 = vmatprep.subr.mxu0 0.0
        %1266 = vmatpush1.msra.mxu0 0.0
        %1267 = vmatprep.subr.mxu0 0.0
        %1268 = vmatpush1.msra.mxu0 0.0
        %1269 = vmatprep.subr.mxu0 0.0
        %1270 = vmatpush1.msra.mxu0 0.0
        %1271 = vmatprep.subr.mxu0 0.0
        %1272 = vmatpush1.msra.mxu0 0.0
        %1273 = vmatprep.subr.mxu0 0.0
        %1274 = vmatpush1.msra.mxu0 0.0
        %1275 = vmatprep.subr.mxu0 0.0
        %1276 = vmatpush1.msra.mxu0 0.0
        %1277 = vmatprep.subr.mxu0 0.0
        %1278 = vmatpush1.msra.mxu0 0.0
        %1279 = vmatprep.subr.mxu0 0.0
        %1280 = vmatpush1.msra.mxu0 0.0
        %1281 = vmatprep.subr.mxu0 0.0
        %1282 = vmatpush1.msra.mxu0 0.0
        %1283 = vmatprep.subr.mxu0 0.0
        %1284 = vmatpush1.msra.mxu0 0.0
        %1285 = vmatprep.subr.mxu0 0.0
        %1286 = vmatpush1.msra.mxu0 0.0
        %1287 = vmatprep.subr.mxu0 0.0
        %1288 = vmatpush1.msra.mxu0 0.0
        %1289 = vmatprep.subr.mxu0 0.0
        %1290 = vmatpush1.msra.mxu0 0.0
        %1291 = vmatprep.subr.mxu0 0.0
        %1292 = vmatpush1.msra.mxu0 0.0
        %1293 = vmatprep.subr.mxu0 0.0
        %1294 = vmatpush1.msra.mxu0 0.0
        %1295 = vmatprep.subr.mxu0 0.0
        %1296 = vmatpush1.msra.mxu0 0.0
        %1297 = vmatprep.subr.mxu0 0.0
        %1298 = vmatpush1.msra.mxu0 0.0
        %1299 = vmatprep.subr.mxu0 0.0
        %1300 = vmatpush1.msra.mxu0 0.0
        %1301 = vmatprep.subr.mxu0 0.0
        %1302 = vmatpush1.msra.mxu0 0.0
        %1303 = vmatprep.subr.mxu0 0.0
        %1304 = vmatpush1.msra.mxu0 0.0
        %1305 = vmatprep.subr.mxu0 0.0
        %1306 = vmatpush1.msra.mxu0 0.0
        %1307 = vmatprep.subr.mxu0 0.0
        %1308 = vmatpush1.msra.mxu0 0.0
        %1309 = vmatprep.subr.mxu0 0.0
        %1310 = vmatpush1.msra.mxu0 0.0
        %1311 = vmatprep.mubr.f32.mxu0 0.0
        %v1312 = vand.u32 %v1051, 4294901760
        %v1313 = vsub.f32 %v1051, %v1312
        %1314 = vmatmul.mubr.f32.gmra.mrb[0].mxu0 %v1313
        %v1315 = vpop.f32.mrb[0].mxu0
        %v1316 = vadd.f32 %v1232, %v1315
        %v1317 = vpop.f32.mrb[0].mxu0
        %1318 = vdwg.mxu0
        %1319 = vmatprep.subr.mxu0 0.0
        %v1320 = vand.u32 %v1042, 4294901760
        %1321 = vmatpush1.msra.mxu0 %v1320
        %1322 = vmatprep.subr.mxu0 0.0
        %v1323 = vand.u32 %v1043, 4294901760
        %1324 = vmatpush1.msra.mxu0 %v1323
        %1325 = vmatprep.subr.mxu0 0.0
        %v1326 = vand.u32 %v1044, 4294901760
        %1327 = vmatpush1.msra.mxu0 %v1326
        %1328 = vmatprep.subr.mxu0 0.0
        %v1329 = vand.u32 %v1045, 4294901760
        %1330 = vmatpush1.msra.mxu0 %v1329
        %1331 = vmatprep.subr.mxu0 0.0
        %v1332 = vand.u32 %v1046, 4294901760
        %1333 = vmatpush1.msra.mxu0 %v1332
        %1334 = vmatprep.subr.mxu0 0.0
        %v1335 = vand.u32 %v1047, 4294901760
        %1336 = vmatpush1.msra.mxu0 %v1335
        %1337 = vmatprep.subr.mxu0 0.0
        %1338 = vmatpush1.msra.mxu0 0.0
        %1339 = vmatprep.subr.mxu0 0.0
        %1340 = vmatpush1.msra.mxu0 0.0
        %1341 = vmatprep.subr.mxu0 0.0
        %1342 = vmatpush1.msra.mxu0 0.0
        %1343 = vmatprep.subr.mxu0 0.0
        %1344 = vmatpush1.msra.mxu0 0.0
        %1345 = vmatprep.subr.mxu0 0.0
        %1346 = vmatpush1.msra.mxu0 0.0
        %1347 = vmatprep.subr.mxu0 0.0
        %1348 = vmatpush1.msra.mxu0 0.0
        %1349 = vmatprep.subr.mxu0 0.0
        %1350 = vmatpush1.msra.mxu0 0.0
        %1351 = vmatprep.subr.mxu0 0.0
        %1352 = vmatpush1.msra.mxu0 0.0
        %1353 = vmatprep.subr.mxu0 0.0
        %1354 = vmatpush1.msra.mxu0 0.0
        %1355 = vmatprep.subr.mxu0 0.0
        %1356 = vmatpush1.msra.mxu0 0.0
        %1357 = vmatprep.subr.mxu0 0.0
        %1358 = vmatpush1.msra.mxu0 0.0
        %1359 = vmatprep.subr.mxu0 0.0
        %1360 = vmatpush1.msra.mxu0 0.0
        %1361 = vmatprep.subr.mxu0 0.0
        %1362 = vmatpush1.msra.mxu0 0.0
        %1363 = vmatprep.subr.mxu0 0.0
        %1364 = vmatpush1.msra.mxu0 0.0
        %1365 = vmatprep.subr.mxu0 0.0
        %1366 = vmatpush1.msra.mxu0 0.0
        %1367 = vmatprep.subr.mxu0 0.0
        %1368 = vmatpush1.msra.mxu0 0.0
        %1369 = vmatprep.subr.mxu0 0.0
        %1370 = vmatpush1.msra.mxu0 0.0
        %1371 = vmatprep.subr.mxu0 0.0
        %1372 = vmatpush1.msra.mxu0 0.0
        %1373 = vmatprep.subr.mxu0 0.0
        %1374 = vmatpush1.msra.mxu0 0.0
        %1375 = vmatprep.subr.mxu0 0.0
        %1376 = vmatpush1.msra.mxu0 0.0
        %1377 = vmatprep.subr.mxu0 0.0
        %1378 = vmatpush1.msra.mxu0 0.0
        %1379 = vmatprep.subr.mxu0 0.0
        %1380 = vmatpush1.msra.mxu0 0.0
        %1381 = vmatprep.subr.mxu0 0.0
        %1382 = vmatpush1.msra.mxu0 0.0
        %1383 = vmatprep.subr.mxu0 0.0
        %1384 = vmatpush1.msra.mxu0 0.0
        %1385 = vmatprep.subr.mxu0 0.0
        %1386 = vmatpush1.msra.mxu0 0.0
        %1387 = vmatprep.subr.mxu0 0.0
        %1388 = vmatpush1.msra.mxu0 0.0
        %1389 = vmatprep.mubr.f32.mxu0 0.0
        %v1390 = vand.u32 %v1051, 4294901760
        %v1391 = vsub.f32 %v1051, %v1390
        %v1392 = vand.u32 %v1391, 4294901760
        %1393 = vmatmul.mubr.f32.gmra.mrb[0].mxu0 %v1392
        %v1394 = vpop.f32.mrb[0].mxu0
        %v1395 = vadd.f32 %v1316, %v1394
        %v1396 = vpop.f32.mrb[0].mxu0
        %1397 = vdwg.mxu0
        %1398 = vmatprep.subr.mxu0 0.0
        %v1399 = vand.u32 %v1042, 4294901760
        %v1400 = vsub.f32 %v1042, %v1399
        %v1401 = vand.u32 %v1400, 4294901760
        %1402 = vmatpush1.msra.mxu0 %v1401
        %1403 = vmatprep.subr.mxu0 0.0
        %v1404 = vand.u32 %v1043, 4294901760
        %v1405 = vsub.f32 %v1043, %v1404
        %v1406 = vand.u32 %v1405, 4294901760
        %1407 = vmatpush1.msra.mxu0 %v1406
        %1408 = vmatprep.subr.mxu0 0.0
        %v1409 = vand.u32 %v1044, 4294901760
        %v1410 = vsub.f32 %v1044, %v1409
        %v1411 = vand.u32 %v1410, 4294901760
        %1412 = vmatpush1.msra.mxu0 %v1411
        %1413 = vmatprep.subr.mxu0 0.0
        %v1414 = vand.u32 %v1045, 4294901760
        %v1415 = vsub.f32 %v1045, %v1414
        %v1416 = vand.u32 %v1415, 4294901760
        %1417 = vmatpush1.msra.mxu0 %v1416
        %1418 = vmatprep.subr.mxu0 0.0
        %v1419 = vand.u32 %v1046, 4294901760
        %v1420 = vsub.f32 %v1046, %v1419
        %v1421 = vand.u32 %v1420, 4294901760
        %1422 = vmatpush1.msra.mxu0 %v1421
        %1423 = vmatprep.subr.mxu0 0.0
        %v1424 = vand.u32 %v1047, 4294901760
        %v1425 = vsub.f32 %v1047, %v1424
        %v1426 = vand.u32 %v1425, 4294901760
        %1427 = vmatpush1.msra.mxu0 %v1426
        %1428 = vmatprep.subr.mxu0 0.0
        %1429 = vmatpush1.msra.mxu0 0.0
        %1430 = vmatprep.subr.mxu0 0.0
        %1431 = vmatpush1.msra.mxu0 0.0
        %1432 = vmatprep.subr.mxu0 0.0
        %1433 = vmatpush1.msra.mxu0 0.0
        %1434 = vmatprep.subr.mxu0 0.0
        %1435 = vmatpush1.msra.mxu0 0.0
        %1436 = vmatprep.subr.mxu0 0.0
        %1437 = vmatpush1.msra.mxu0 0.0
        %1438 = vmatprep.subr.mxu0 0.0
        %1439 = vmatpush1.msra.mxu0 0.0
        %1440 = vmatprep.subr.mxu0 0.0
        %1441 = vmatpush1.msra.mxu0 0.0
        %1442 = vmatprep.subr.mxu0 0.0
        %1443 = vmatpush1.msra.mxu0 0.0
        %1444 = vmatprep.subr.mxu0 0.0
        %1445 = vmatpush1.msra.mxu0 0.0
        %1446 = vmatprep.subr.mxu0 0.0
        %1447 = vmatpush1.msra.mxu0 0.0
        %1448 = vmatprep.subr.mxu0 0.0
        %1449 = vmatpush1.msra.mxu0 0.0
        %1450 = vmatprep.subr.mxu0 0.0
        %1451 = vmatpush1.msra.mxu0 0.0
        %1452 = vmatprep.subr.mxu0 0.0
        %1453 = vmatpush1.msra.mxu0 0.0
        %1454 = vmatprep.subr.mxu0 0.0
        %1455 = vmatpush1.msra.mxu0 0.0
        %1456 = vmatprep.subr.mxu0 0.0
        %1457 = vmatpush1.msra.mxu0 0.0
        %1458 = vmatprep.subr.mxu0 0.0
        %1459 = vmatpush1.msra.mxu0 0.0
        %1460 = vmatprep.subr.mxu0 0.0
        %1461 = vmatpush1.msra.mxu0 0.0
        %1462 = vmatprep.subr.mxu0 0.0
        %1463 = vmatpush1.msra.mxu0 0.0
        %1464 = vmatprep.subr.mxu0 0.0
        %1465 = vmatpush1.msra.mxu0 0.0
        %1466 = vmatprep.subr.mxu0 0.0
        %1467 = vmatpush1.msra.mxu0 0.0
        %1468 = vmatprep.subr.mxu0 0.0
        %1469 = vmatpush1.msra.mxu0 0.0
        %1470 = vmatprep.subr.mxu0 0.0
        %1471 = vmatpush1.msra.mxu0 0.0
        %1472 = vmatprep.subr.mxu0 0.0
        %1473 = vmatpush1.msra.mxu0 0.0
        %1474 = vmatprep.subr.mxu0 0.0
        %1475 = vmatpush1.msra.mxu0 0.0
        %1476 = vmatprep.subr.mxu0 0.0
        %1477 = vmatpush1.msra.mxu0 0.0
        %1478 = vmatprep.subr.mxu0 0.0
        %1479 = vmatpush1.msra.mxu0 0.0
        %1480 = vmatprep.mubr.f32.mxu0 0.0
        %v1481 = vand.u32 %v1051, 4294901760
        %1482 = vmatmul.mubr.f32.gmra.mrb[0].mxu0 %v1481
        %v1483 = vpop.f32.mrb[0].mxu0
        %v1484 = vadd.f32 %v1395, %v1483
        %v1485 = vpop.f32.mrb[0].mxu0
        %1486 = vdwg.mxu0
        %1487 = vmatprep.subr.mxu0 0.0
        %v1488 = vand.u32 %v1042, 4294901760
        %1489 = vmatpush1.msra.mxu0 %v1488
        %1490 = vmatprep.subr.mxu0 0.0
        %v1491 = vand.u32 %v1043, 4294901760
        %1492 = vmatpush1.msra.mxu0 %v1491
        %1493 = vmatprep.subr.mxu0 0.0
        %v1494 = vand.u32 %v1044, 4294901760
        %1495 = vmatpush1.msra.mxu0 %v1494
        %1496 = vmatprep.subr.mxu0 0.0
        %v1497 = vand.u32 %v1045, 4294901760
        %1498 = vmatpush1.msra.mxu0 %v1497
        %1499 = vmatprep.subr.mxu0 0.0
        %v1500 = vand.u32 %v1046, 4294901760
        %1501 = vmatpush1.msra.mxu0 %v1500
        %1502 = vmatprep.subr.mxu0 0.0
        %v1503 = vand.u32 %v1047, 4294901760
        %1504 = vmatpush1.msra.mxu0 %v1503
        %1505 = vmatprep.subr.mxu0 0.0
        %1506 = vmatpush1.msra.mxu0 0.0
        %1507 = vmatprep.subr.mxu0 0.0
        %1508 = vmatpush1.msra.mxu0 0.0
        %1509 = vmatprep.subr.mxu0 0.0
        %1510 = vmatpush1.msra.mxu0 0.0
        %1511 = vmatprep.subr.mxu0 0.0
        %1512 = vmatpush1.msra.mxu0 0.0
        %1513 = vmatprep.subr.mxu0 0.0
        %1514 = vmatpush1.msra.mxu0 0.0
        %1515 = vmatprep.subr.mxu0 0.0
        %1516 = vmatpush1.msra.mxu0 0.0
        %1517 = vmatprep.subr.mxu0 0.0
        %1518 = vmatpush1.msra.mxu0 0.0
        %1519 = vmatprep.subr.mxu0 0.0
        %1520 = vmatpush1.msra.mxu0 0.0
        %1521 = vmatprep.subr.mxu0 0.0
        %1522 = vmatpush1.msra.mxu0 0.0
        %1523 = vmatprep.subr.mxu0 0.0
        %1524 = vmatpush1.msra.mxu0 0.0
        %1525 = vmatprep.subr.mxu0 0.0
        %1526 = vmatpush1.msra.mxu0 0.0
        %1527 = vmatprep.subr.mxu0 0.0
        %1528 = vmatpush1.msra.mxu0 0.0
        %1529 = vmatprep.subr.mxu0 0.0
        %1530 = vmatpush1.msra.mxu0 0.0
        %1531 = vmatprep.subr.mxu0 0.0
        %1532 = vmatpush1.msra.mxu0 0.0
        %1533 = vmatprep.subr.mxu0 0.0
        %1534 = vmatpush1.msra.mxu0 0.0
        %1535 = vmatprep.subr.mxu0 0.0
        %1536 = vmatpush1.msra.mxu0 0.0
        %1537 = vmatprep.subr.mxu0 0.0
        %1538 = vmatpush1.msra.mxu0 0.0
        %1539 = vmatprep.subr.mxu0 0.0
        %1540 = vmatpush1.msra.mxu0 0.0
        %1541 = vmatprep.subr.mxu0 0.0
        %1542 = vmatpush1.msra.mxu0 0.0
        %1543 = vmatprep.subr.mxu0 0.0
        %1544 = vmatpush1.msra.mxu0 0.0
        %1545 = vmatprep.subr.mxu0 0.0
        %1546 = vmatpush1.msra.mxu0 0.0
        %1547 = vmatprep.subr.mxu0 0.0
        %1548 = vmatpush1.msra.mxu0 0.0
        %1549 = vmatprep.subr.mxu0 0.0
        %1550 = vmatpush1.msra.mxu0 0.0
        %1551 = vmatprep.subr.mxu0 0.0
        %1552 = vmatpush1.msra.mxu0 0.0
        %1553 = vmatprep.subr.mxu0 0.0
        %1554 = vmatpush1.msra.mxu0 0.0
        %1555 = vmatprep.subr.mxu0 0.0
        %1556 = vmatpush1.msra.mxu0 0.0
        %1557 = vmatprep.mubr.f32.mxu0 0.0
        %v1558 = vand.u32 %v1051, 4294901760
        %1559 = vmatmul.mubr.f32.gmra.mrb[0].mxu0 %v1558
        %v1560 = vpop.f32.mrb[0].mxu0
        %v1561 = vadd.f32 %v1484, %v1560
        %v1562 = vpop.f32.mrb[0].mxu0
        %1563 = vdwg.mxu0
        %1564 = vst [vmem:[%s387] sm:$0x1f] %v1561
        %p1565 = scmp.lt.s32.totalorder %s35, 2
        %s1566 = scalar_select %p1565, %s35, 2
        %p1567 = scmp.lt.s32.totalorder %s34, 0
        %s1568 = scalar_select %p1567, %s34, 0
        %s1569 = sadd.s32 %s1568, %s1566
        %s1570 = smul.addr %s1569, 8
        %s1571 = scalar_lea.vmem %s7, %s1570
        // Predicated region
        $region53: #{tpu_custom_call.1} parent=43 // pred_check
          %p1572 = pneg %p216
        $region54: #{tpu_custom_call.1} parent=43 // pred_check_branch
          %1574 = sbr.rel (%p1572) target = $region56
        $region55: #{tpu_custom_call.1} parent=43 // pred_region
          _
        $region56: #{tpu_custom_call.1} parent=43 // pred_fallthru
          _
      $region44: #{tpu_custom_call.1} parent=5 // pred_fallthru
        _
      %p1575 = scmp.le.s32.totalorder 2, %s25
      // Predicated region
      $region57: #{tpu_custom_call.1} parent=5 // pred_check
        %p1576 = pneg %p1575
      $region58: #{tpu_custom_call.1} parent=5 // pred_check_branch
        %1578 = sbr.rel (%p1576) target = $region60
      $region59: #{tpu_custom_call.1} parent=5 // pred_region
        %s1579 = ssub.s32 %s25, 2
        // Predicated region
        $region61: #{tpu_custom_call.1} parent=59 // pred_check
          %p1580 = pneg %p222
        $region62: #{tpu_custom_call.1} parent=59 // pred_check_branch
          %1582 = sbr.rel (%p1580) target = $region64
        $region63: #{tpu_custom_call.1} parent=59 // pred_region
          %p1583 = scmp.lt.s32.totalorder %s37, 2
          %s1584 = scalar_select %p1583, %s37, 2
          %p1585 = scmp.lt.s32.totalorder %s36, 0
          %s1586 = scalar_select %p1585, %s36, 0
          %s1587 = sadd.s32 %s1586, %s1584
          %s1588 = smul.addr %s1587, 8
          %s1589 = scalar_lea.vmem %s7, %s1588
        $region64: #{tpu_custom_call.1} parent=59 // pred_fallthru
          _
      $region60: #{tpu_custom_call.1} parent=5 // pred_fallthru
        _
    $region6: #{tpu_custom_call.1} parent=1 // loop_footer
      %s29 = sadd.s32 1, %s25
    $region7: #{tpu_custom_call.1} parent=1 // loop_footer_branch
      %24 = sbr.rel target = $region3
    $region8: #{tpu_custom_call.1} parent=1 // loop_exit
      _
    %1590 = vsyncpa [#allocation5], 1
    %s1591 = scalar_lea.sflag [#allocation5], 1
    %1592 = vsyncpa %s1591, 1
    %1593 = vsyncpa [#allocation7], 1
    %s1594 = scalar_lea.sflag [#allocation7], 1
    %1595 = vsyncpa %s1594, 1

</llo_original>
